<compile_context>
chip_gen: v7x
topology: tpu7x:2x2x1
jax: 0.10.0
libtpu: 0.0.40
codegen_flags: <defaults>
</compile_context>

<pallas_src>
import functools

import jax
import jax.numpy as jnp
from jax.experimental import pallas as pl
from jax.experimental.pallas import tpu as pltpu

LANE = 128


def _round_up(x, m):
    return ((x + m - 1) // m) * m


def _pad2d(x, rows, cols):
    r, c = x.shape
    return jnp.pad(x, ((0, rows - r), (0, cols - c)))


def _pick_tiles(n):
    """Pick (n_pad, tm, tk) so tm | n_pad and tk | n_pad, all 128-aligned."""
    n128 = _round_up(n, LANE)
    tm = min(256, n128)
    tk = min(512, n128)
    n_pad = _round_up(n128, tm)
    n_pad = _round_up(n_pad, tk)
    return n_pad, tm, tk


def _sage_layer_kernel(adj_ref, xk_ref, xi_ref, w_ref, b_ref, out_ref, cat_ref,
                       *, feat_pad, relu, logsm_valid):
    """One fused SAGEConv('mean') layer for one (tm x O_pad) output tile.

    Grid = (row tiles, reduction tiles over adjacency columns).
    cat_ref : VMEM scratch (tm, 2*feat_pad) f32 — left half holds the self features,
              right half accumulates A_mean @ x across the reduction axis.
    """
    k = pl.program_id(1)

    # bf16 adjacency tile @ bf16 feature tile -> f32 partial aggregation (MXU).
    neigh = jnp.dot(adj_ref[...], xk_ref[...], preferred_element_type=jnp.float32)

    @pl.when(k == 0)
    def _init():
        cat_ref[:, :feat_pad] = xi_ref[...].astype(jnp.float32)
        cat_ref[:, feat_pad:] = neigh

    @pl.when(k != 0)
    def _accumulate():
        cat_ref[:, feat_pad:] += neigh

    @pl.when(k == pl.num_programs(1) - 1)
    def _finalize():
        # Fused projection: [x | A@x] @ [W_self; W_neigh]  (single MXU pass, K = 2*F_pad).
        h = jnp.dot(cat_ref[...], w_ref[...],
                    preferred_element_type=jnp.float32) + b_ref[...]
        if relu:
            h = jnp.maximum(h, 0.0)
        if logsm_valid is not None:
            # log_softmax over the real class columns only (rest is lane padding).
            col = jax.lax.broadcasted_iota(jnp.int32, h.shape, 1)
            valid = col < logsm_valid
            hm = jnp.where(valid, h, jnp.float32(-1e30))
            m = jnp.max(hm, axis=1, keepdims=True)
            z = hm - m
            e = jnp.where(valid, jnp.exp(z), 0.0)
            h = z - jnp.log(jnp.sum(e, axis=1, keepdims=True))
        out_ref[...] = h.astype(out_ref.dtype)


def _sage_layer(adj, x, w_cat, b, *, out_dtype, relu, logsm_valid, tm, tk):
    n_pad = adj.shape[0]
    f_pad = x.shape[1]
    o_pad = w_cat.shape[1]
    grid = (n_pad // tm, n_pad // tk)

    kernel = functools.partial(_sage_layer_kernel, feat_pad=f_pad,
                               relu=relu, logsm_valid=logsm_valid)

    return pl.pallas_call(
        kernel,
        out_shape=jax.ShapeDtypeStruct((n_pad, o_pad), out_dtype),
        grid_spec=pltpu.PrefetchScalarGridSpec(
            num_scalar_prefetch=0,
            grid=grid,
            in_specs=[
                pl.BlockSpec((tm, tk), lambda i, k: (i, k)),        # adj tile
                pl.BlockSpec((tk, f_pad), lambda i, k: (k, 0)),     # features for aggregation
                pl.BlockSpec((tm, f_pad), lambda i, k: (i, 0)),     # self features (row tile)
                pl.BlockSpec((2 * f_pad, o_pad), lambda i, k: (0, 0)),  # [W_self; W_neigh]
                pl.BlockSpec((1, o_pad), lambda i, k: (0, 0)),      # bias
            ],
            out_specs=pl.BlockSpec((tm, o_pad), lambda i, k: (i, 0)),
            scratch_shapes=[pltpu.VMEM((tm, 2 * f_pad), jnp.float32)],
        ),
        compiler_params=pltpu.CompilerParams(
            dimension_semantics=("parallel", "arbitrary"),
            vmem_limit_bytes=32 * 1024 * 1024,
        ),
    )(adj, x, x, w_cat, b)


@jax.jit
def sage_net_forward(adj_norm, feat, w1s, w1n, b1, w2s, w2n, b2):
    n, f = feat.shape
    h = w1s.shape[1]
    c = w2s.shape[1]

    n_pad, tm, tk = _pick_tiles(n)
    f_pad = _round_up(f, LANE)
    h_pad = _round_up(h, LANE)
    c_pad = _round_up(c, LANE)

    # Zero padding keeps the math exact: padded adj rows/cols and feature rows are zero.
    adj_p = _pad2d(adj_norm, n_pad, n_pad).astype(jnp.bfloat16)
    x_p = _pad2d(feat, n_pad, f_pad).astype(jnp.bfloat16)

    w1_cat = jnp.concatenate(
        [_pad2d(w1s, f_pad, h_pad), _pad2d(w1n, f_pad, h_pad)], axis=0)  # [2F_pad, H_pad]
    b1_p = _pad2d(b1, 1, h_pad)
    w2_cat = jnp.concatenate(
        [_pad2d(w2s, h_pad, c_pad), _pad2d(w2n, h_pad, c_pad)], axis=0)  # [2H_pad, C_pad]
    b2_p = _pad2d(b2, 1, c_pad)

    # Layer 1: SAGEConv + ReLU (bf16 output feeds layer-2 aggregation; f32 accumulation inside).
    h1 = _sage_layer(adj_p, x_p, w1_cat, b1_p, out_dtype=jnp.bfloat16,
                     relu=True, logsm_valid=None, tm=tm, tk=tk)

    # Dropout: identity (eval mode).

    # Layer 2: SAGEConv + masked log_softmax over the real classes.
    out = _sage_layer(adj_p, h1, w2_cat, b2_p, out_dtype=jnp.float32,
                      relu=False, logsm_valid=c, tm=tm, tk=tk)

    return out[:n, :c]


def build_row_normalized_adj(key, n_nodes):
    # Random directed graph; mean aggregation over in-neighbors (row-normalize).
    a = (jax.random.uniform(key, (n_nodes, n_nodes)) < 0.3).astype(jnp.float32)
    a = a * (1.0 - jnp.eye(n_nodes, dtype=jnp.float32))  # no self loops
    deg = jnp.sum(a, axis=1, keepdims=True)
    return a / jnp.maximum(deg, 1.0)                     # nodes with no in-edges -> zero row


if __name__ == "__main__":
    N_NODES = 16
    NUM_FEATURES = 32
    HIDDEN = 32
    NUM_CLASSES = 4

    key = jax.random.PRNGKey(0)
    k_adj, k_feat, k1, k2, k3, k4 = jax.random.split(key, 6)

    adj_norm = build_row_normalized_adj(k_adj, N_NODES)
    feat = jax.random.normal(k_feat, (N_NODES, NUM_FEATURES), dtype=jnp.float32)

    # Deterministic parameter init (scaled normals), stored as [in, out].
    w1_self = 0.1 * jax.random.normal(k1, (NUM_FEATURES, HIDDEN), dtype=jnp.float32)
    w1_neigh = 0.1 * jax.random.normal(k2, (NUM_FEATURES, HIDDEN), dtype=jnp.float32)
    b1 = jnp.zeros((1, HIDDEN), dtype=jnp.float32)
    w2_self = 0.1 * jax.random.normal(k3, (HIDDEN, NUM_CLASSES), dtype=jnp.float32)
    w2_neigh = 0.1 * jax.random.normal(k4, (HIDDEN, NUM_CLASSES), dtype=jnp.float32)
    b2 = jnp.zeros((1, NUM_CLASSES), dtype=jnp.float32)

    out = sage_net_forward(adj_norm, feat, w1_self, w1_neigh, b1,
                           w2_self, w2_neigh, b2)
    out = jax.block_until_ready(out)

    # sanity: shape and log_softmax rows must sum to ~1 in prob space
    assert out.shape == (N_NODES, NUM_CLASSES)
    assert jnp.allclose(jnp.sum(jnp.exp(out), axis=1), 1.0, atol=1e-4)

    # pure-JAX reference (f32) — bf16 streaming of adj/activations gives small deltas
    ref_h1 = jnp.maximum(feat @ w1_self + (adj_norm @ feat) @ w1_neigh + b1, 0.0)
    ref_h2 = ref_h1 @ w2_self + (adj_norm @ ref_h1) @ w2_neigh + b2
    ref = jax.nn.log_softmax(ref_h2, axis=1)
    assert jnp.max(jnp.abs(out - ref)) < 0.1

    print("KERNEL_OK")
</pallas_src>

<mosaic_0001>
module attributes {stable_mosaic.version = 11 : i64} {
  func.func @_sage_layer_kernel(%arg0: i32, %arg1: i32, %arg2: memref<128x128xbf16, #tpu.memory_space<vmem>>, %arg3: memref<128x128xbf16, #tpu.memory_space<vmem>>, %arg4: memref<128x128xbf16, #tpu.memory_space<vmem>>, %arg5: memref<256x128xf32, #tpu.memory_space<vmem>>, %arg6: memref<1x128xf32, #tpu.memory_space<vmem>>, %arg7: memref<128x128xbf16, #tpu.memory_space<vmem>>, %arg8: memref<128x256xf32, #tpu.memory_space<vmem>>) attributes {dimension_semantics = [#tpu.dimension_semantics<parallel>, #tpu.dimension_semantics<arbitrary>], iteration_bounds = array<i64: 1, 1>, scalar_prefetch = 0 : i64, scratch_operands = 1 : i64, tpu.core_type = #tpu.core_type<tc>, window_params = [{transform_indices = @transform_0, window_bounds = array<i64: 128, 128>}, {transform_indices = @transform_1, window_bounds = array<i64: 128, 128>}, {transform_indices = @transform_2, window_bounds = array<i64: 128, 128>}, {pipeline_mode = #tpu.pipeline_mode<synchronous>, transform_indices = @transform_3, window_bounds = array<i64: 256, 128>}, {pipeline_mode = #tpu.pipeline_mode<synchronous>, transform_indices = @transform_4, window_bounds = array<i64: 1, 128>}, {transform_indices = @transform_5, window_bounds = array<i64: 128, 128>}]} {
    %c0 = arith.constant 0 : index
    %c0_0 = arith.constant 0 : index
    %0 = vector.load %arg2[%c0, %c0_0] : memref<128x128xbf16, #tpu.memory_space<vmem>>, vector<128x128xbf16>
    %c0_1 = arith.constant 0 : index
    %c0_2 = arith.constant 0 : index
    %1 = vector.load %arg3[%c0_1, %c0_2] : memref<128x128xbf16, #tpu.memory_space<vmem>>, vector<128x128xbf16>
    %cst = arith.constant dense<0.000000e+00> : vector<128x128xf32>
    %2 = tpu.matmul %0, %1, %cst {dimension_numbers = #tpu.dot_dimension_numbers<[1], [0], [0], [1], [0, 0, 1, 1], [], []>} : vector<128x128xbf16>, vector<128x128xbf16>, vector<128x128xf32> -> vector<128x128xf32>
    %c0_i32 = arith.constant 0 : i32
    %3 = arith.cmpi eq, %arg1, %c0_i32 : i32
    %4 = arith.extui %3 : i1 to i32
    %c0_i32_3 = arith.constant 0 : i32
    %5 = arith.cmpi ne, %4, %c0_i32_3 : i32
    scf.if %5 {
      %c0_8 = arith.constant 0 : index
      %c0_9 = arith.constant 0 : index
      %12 = vector.load %arg4[%c0_8, %c0_9] : memref<128x128xbf16, #tpu.memory_space<vmem>>, vector<128x128xbf16>
      %13 = arith.extf %12 : vector<128x128xbf16> to vector<128x128xf32>
      %c0_10 = arith.constant 0 : index
      %c0_11 = arith.constant 0 : index
      %14 = vector.load %arg8[%c0_10, %c0_11] : memref<128x256xf32, #tpu.memory_space<vmem>>, vector<128x128xf32>
      tpu.vector_store %arg8[%c0_10, %c0_11], %13 {strides = array<i32>} : memref<128x256xf32, #tpu.memory_space<vmem>>, vector<128x128xf32>,
      %c0_12 = arith.constant 0 : index
      %c128 = arith.constant 128 : index
      %15 = vector.load %arg8[%c0_12, %c128] : memref<128x256xf32, #tpu.memory_space<vmem>>, vector<128x128xf32>
      tpu.vector_store %arg8[%c0_12, %c128], %2 {strides = array<i32>} : memref<128x256xf32, #tpu.memory_space<vmem>>, vector<128x128xf32>,
    } else {
    }
    %c0_i32_4 = arith.constant 0 : i32
    %6 = arith.cmpi ne, %arg1, %c0_i32_4 : i32
    %7 = arith.extui %6 : i1 to i32
    %c0_i32_5 = arith.constant 0 : i32
    %8 = arith.cmpi ne, %7, %c0_i32_5 : i32
    scf.if %8 {
      %c0_8 = arith.constant 0 : index
      %c128 = arith.constant 128 : index
      %12 = vector.load %arg8[%c0_8, %c128] : memref<128x256xf32, #tpu.memory_space<vmem>>, vector<128x128xf32>
      %13 = arith.addf %12, %2 : vector<128x128xf32>
      %c0_9 = arith.constant 0 : index
      %c128_10 = arith.constant 128 : index
      %14 = vector.load %arg8[%c0_9, %c128_10] : memref<128x256xf32, #tpu.memory_space<vmem>>, vector<128x128xf32>
      tpu.vector_store %arg8[%c0_9, %c128_10], %13 {strides = array<i32>} : memref<128x256xf32, #tpu.memory_space<vmem>>, vector<128x128xf32>,
    } else {
    }
    %c0_i32_6 = arith.constant 0 : i32
    %9 = arith.cmpi eq, %arg1, %c0_i32_6 : i32
    %10 = arith.extui %9 : i1 to i32
    %c0_i32_7 = arith.constant 0 : i32
    %11 = arith.cmpi ne, %10, %c0_i32_7 : i32
    scf.if %11 {
      %c0_8 = arith.constant 0 : index
      %c0_9 = arith.constant 0 : index
      %12 = vector.load %arg8[%c0_8, %c0_9] : memref<128x256xf32, #tpu.memory_space<vmem>>, vector<128x256xf32>
      %c0_10 = arith.constant 0 : index
      %c0_11 = arith.constant 0 : index
      %13 = vector.load %arg5[%c0_10, %c0_11] : memref<256x128xf32, #tpu.memory_space<vmem>>, vector<256x128xf32>
      %cst_12 = arith.constant dense<0.000000e+00> : vector<128x128xf32>
      %14 = tpu.matmul %12, %13, %cst_12 {dimension_numbers = #tpu.dot_dimension_numbers<[1], [0], [0], [1], [0, 0, 1, 1], [], []>} : vector<128x256xf32>, vector<256x128xf32>, vector<128x128xf32> -> vector<128x128xf32>
      %c0_13 = arith.constant 0 : index
      %c0_14 = arith.constant 0 : index
      %15 = vector.load %arg6[%c0_13, %c0_14] : memref<1x128xf32, #tpu.memory_space<vmem>>, vector<1x128xf32>
      %16 = vector.broadcast %15 : vector<1x128xf32> to vector<128x128xf32>
      %17 = arith.addf %14, %16 : vector<128x128xf32>
      %cst_15 = arith.constant 0.000000e+00 : f32
      %18 = vector.broadcast %cst_15 : f32 to vector<128x128xf32>
      %19 = arith.maximumf %17, %18 : vector<128x128xf32>
      %20 = arith.truncf %19 : vector<128x128xf32> to vector<128x128xbf16>
      %c0_16 = arith.constant 0 : index
      %c0_17 = arith.constant 0 : index
      %21 = vector.load %arg7[%c0_16, %c0_17] : memref<128x128xbf16, #tpu.memory_space<vmem>>, vector<128x128xbf16>
      tpu.vector_store %arg7[%c0_16, %c0_17], %20 {strides = array<i32>} : memref<128x128xbf16, #tpu.memory_space<vmem>>, vector<128x128xbf16>,
    } else {
    }
    return
  }
  func.func @transform_0(%arg0: i32, %arg1: i32) -> (i32, i32) {
    %c0_i32 = arith.constant 0 : i32
    return %arg0, %arg1 : i32, i32
  }
  func.func @transform_1(%arg0: i32, %arg1: i32) -> (i32, i32) {
    %c0_i32 = arith.constant 0 : i32
    %c0_i32_0 = arith.constant 0 : i32
    return %arg1, %c0_i32 : i32, i32
  }
  func.func @transform_2(%arg0: i32, %arg1: i32) -> (i32, i32) {
    %c0_i32 = arith.constant 0 : i32
    %c0_i32_0 = arith.constant 0 : i32
    return %arg0, %c0_i32 : i32, i32
  }
  func.func @transform_3(%arg0: i32, %arg1: i32) -> (i32, i32) {
    %c0_i32 = arith.constant 0 : i32
    %c0_i32_0 = arith.constant 0 : i32
    %c0_i32_1 = arith.constant 0 : i32
    return %c0_i32, %c0_i32_0 : i32, i32
  }
  func.func @transform_4(%arg0: i32, %arg1: i32) -> (i32, i32) {
    %c0_i32 = arith.constant 0 : i32
    %c0_i32_0 = arith.constant 0 : i32
    %c0_i32_1 = arith.constant 0 : i32
    return %c0_i32, %c0_i32_0 : i32, i32
  }
  func.func @transform_5(%arg0: i32, %arg1: i32) -> (i32, i32) {
    %c0_i32 = arith.constant 0 : i32
    %c0_i32_0 = arith.constant 0 : i32
    return %arg0, %c0_i32 : i32, i32
  }
}

module attributes {stable_mosaic.version = 11 : i64} {
  func.func @_sage_layer_kernel(%arg0: i32, %arg1: i32, %arg2: memref<128x128xbf16, #tpu.memory_space<vmem>>, %arg3: memref<128x128xbf16, #tpu.memory_space<vmem>>, %arg4: memref<128x128xbf16, #tpu.memory_space<vmem>>, %arg5: memref<256x128xf32, #tpu.memory_space<vmem>>, %arg6: memref<1x128xf32, #tpu.memory_space<vmem>>, %arg7: memref<128x128xf32, #tpu.memory_space<vmem>>, %arg8: memref<128x256xf32, #tpu.memory_space<vmem>>) attributes {dimension_semantics = [#tpu.dimension_semantics<parallel>, #tpu.dimension_semantics<arbitrary>], iteration_bounds = array<i64: 1, 1>, scalar_prefetch = 0 : i64, scratch_operands = 1 : i64, tpu.core_type = #tpu.core_type<tc>, window_params = [{transform_indices = @transform_0, window_bounds = array<i64: 128, 128>}, {transform_indices = @transform_1, window_bounds = array<i64: 128, 128>}, {transform_indices = @transform_2, window_bounds = array<i64: 128, 128>}, {pipeline_mode = #tpu.pipeline_mode<synchronous>, transform_indices = @transform_3, window_bounds = array<i64: 256, 128>}, {pipeline_mode = #tpu.pipeline_mode<synchronous>, transform_indices = @transform_4, window_bounds = array<i64: 1, 128>}, {transform_indices = @transform_5, window_bounds = array<i64: 128, 128>}]} {
    %c0 = arith.constant 0 : index
    %c0_0 = arith.constant 0 : index
    %0 = vector.load %arg2[%c0, %c0_0] : memref<128x128xbf16, #tpu.memory_space<vmem>>, vector<128x128xbf16>
    %c0_1 = arith.constant 0 : index
    %c0_2 = arith.constant 0 : index
    %1 = vector.load %arg3[%c0_1, %c0_2] : memref<128x128xbf16, #tpu.memory_space<vmem>>, vector<128x128xbf16>
    %cst = arith.constant dense<0.000000e+00> : vector<128x128xf32>
    %2 = tpu.matmul %0, %1, %cst {dimension_numbers = #tpu.dot_dimension_numbers<[1], [0], [0], [1], [0, 0, 1, 1], [], []>} : vector<128x128xbf16>, vector<128x128xbf16>, vector<128x128xf32> -> vector<128x128xf32>
    %c0_i32 = arith.constant 0 : i32
    %3 = arith.cmpi eq, %arg1, %c0_i32 : i32
    %4 = arith.extui %3 : i1 to i32
    %c0_i32_3 = arith.constant 0 : i32
    %5 = arith.cmpi ne, %4, %c0_i32_3 : i32
    scf.if %5 {
      %c0_8 = arith.constant 0 : index
      %c0_9 = arith.constant 0 : index
      %12 = vector.load %arg4[%c0_8, %c0_9] : memref<128x128xbf16, #tpu.memory_space<vmem>>, vector<128x128xbf16>
      %13 = arith.extf %12 : vector<128x128xbf16> to vector<128x128xf32>
      %c0_10 = arith.constant 0 : index
      %c0_11 = arith.constant 0 : index
      %14 = vector.load %arg8[%c0_10, %c0_11] : memref<128x256xf32, #tpu.memory_space<vmem>>, vector<128x128xf32>
      tpu.vector_store %arg8[%c0_10, %c0_11], %13 {strides = array<i32>} : memref<128x256xf32, #tpu.memory_space<vmem>>, vector<128x128xf32>,
      %c0_12 = arith.constant 0 : index
      %c128 = arith.constant 128 : index
      %15 = vector.load %arg8[%c0_12, %c128] : memref<128x256xf32, #tpu.memory_space<vmem>>, vector<128x128xf32>
      tpu.vector_store %arg8[%c0_12, %c128], %2 {strides = array<i32>} : memref<128x256xf32, #tpu.memory_space<vmem>>, vector<128x128xf32>,
    } else {
    }
    %c0_i32_4 = arith.constant 0 : i32
    %6 = arith.cmpi ne, %arg1, %c0_i32_4 : i32
    %7 = arith.extui %6 : i1 to i32
    %c0_i32_5 = arith.constant 0 : i32
    %8 = arith.cmpi ne, %7, %c0_i32_5 : i32
    scf.if %8 {
      %c0_8 = arith.constant 0 : index
      %c128 = arith.constant 128 : index
      %12 = vector.load %arg8[%c0_8, %c128] : memref<128x256xf32, #tpu.memory_space<vmem>>, vector<128x128xf32>
      %13 = arith.addf %12, %2 : vector<128x128xf32>
      %c0_9 = arith.constant 0 : index
      %c128_10 = arith.constant 128 : index
      %14 = vector.load %arg8[%c0_9, %c128_10] : memref<128x256xf32, #tpu.memory_space<vmem>>, vector<128x128xf32>
      tpu.vector_store %arg8[%c0_9, %c128_10], %13 {strides = array<i32>} : memref<128x256xf32, #tpu.memory_space<vmem>>, vector<128x128xf32>,
    } else {
    }
    %c0_i32_6 = arith.constant 0 : i32
    %9 = arith.cmpi eq, %arg1, %c0_i32_6 : i32
    %10 = arith.extui %9 : i1 to i32
    %c0_i32_7 = arith.constant 0 : i32
    %11 = arith.cmpi ne, %10, %c0_i32_7 : i32
    scf.if %11 {
      %c0_8 = arith.constant 0 : index
      %c0_9 = arith.constant 0 : index
      %12 = vector.load %arg8[%c0_8, %c0_9] : memref<128x256xf32, #tpu.memory_space<vmem>>, vector<128x256xf32>
      %c0_10 = arith.constant 0 : index
      %c0_11 = arith.constant 0 : index
      %13 = vector.load %arg5[%c0_10, %c0_11] : memref<256x128xf32, #tpu.memory_space<vmem>>, vector<256x128xf32>
      %cst_12 = arith.constant dense<0.000000e+00> : vector<128x128xf32>
      %14 = tpu.matmul %12, %13, %cst_12 {dimension_numbers = #tpu.dot_dimension_numbers<[1], [0], [0], [1], [0, 0, 1, 1], [], []>} : vector<128x256xf32>, vector<256x128xf32>, vector<128x128xf32> -> vector<128x128xf32>
      %c0_13 = arith.constant 0 : index
      %c0_14 = arith.constant 0 : index
      %15 = vector.load %arg6[%c0_13, %c0_14] : memref<1x128xf32, #tpu.memory_space<vmem>>, vector<1x128xf32>
      %16 = vector.broadcast %15 : vector<1x128xf32> to vector<128x128xf32>
      %17 = arith.addf %14, %16 : vector<128x128xf32>
      %18 = tpu.iota {dimensions = array<i32: 1>} : vector<128x128xi32>
      %c4_i32 = arith.constant 4 : i32
      %19 = vector.broadcast %c4_i32 : i32 to vector<128x128xi32>
      %20 = arith.cmpi slt, %18, %19 : vector<128x128xi32>
      %cst_15 = arith.constant -1.000000e+30 : f32
      %21 = vector.broadcast %cst_15 : f32 to vector<128x128xf32>
      %22 = arith.select %20, %17, %21 : vector<128x128xi1>, vector<128x128xf32>
      %cst_16 = arith.constant dense<0xFF800000> : vector<128xf32>
      %23 = vector.multi_reduction <maximumf>, %22, %cst_16 [1] : vector<128x128xf32> to vector<128xf32>
      %24 = vector.shape_cast %23 : vector<128xf32> to vector<128x1xf32>
      %25 = vector.broadcast %24 : vector<128x1xf32> to vector<128x128xf32>
      %26 = arith.subf %22, %25 : vector<128x128xf32>
      %27 = math.exp %26 : vector<128x128xf32>
      %cst_17 = arith.constant 0.000000e+00 : f32
      %28 = vector.broadcast %cst_17 : f32 to vector<128x128xf32>
      %29 = arith.select %20, %27, %28 : vector<128x128xi1>, vector<128x128xf32>
      %cst_18 = arith.constant dense<0.000000e+00> : vector<128xf32>
      %30 = vector.multi_reduction <add>, %29, %cst_18 [1] : vector<128x128xf32> to vector<128xf32>
      %31 = vector.shape_cast %30 : vector<128xf32> to vector<128x1xf32>
      %32 = math.log %31 : vector<128x1xf32>
      %33 = vector.broadcast %32 : vector<128x1xf32> to vector<128x128xf32>
      %34 = arith.subf %26, %33 : vector<128x128xf32>
      %c0_19 = arith.constant 0 : index
      %c0_20 = arith.constant 0 : index
      %35 = vector.load %arg7[%c0_19, %c0_20] : memref<128x128xf32, #tpu.memory_space<vmem>>, vector<128x128xf32>
      tpu.vector_store %arg7[%c0_19, %c0_20], %34 {strides = array<i32>} : memref<128x128xf32, #tpu.memory_space<vmem>>, vector<128x128xf32>,
    } else {
    }
    return
  }
  func.func @transform_0(%arg0: i32, %arg1: i32) -> (i32, i32) {
    %c0_i32 = arith.constant 0 : i32
    return %arg0, %arg1 : i32, i32
  }
  func.func @transform_1(%arg0: i32, %arg1: i32) -> (i32, i32) {
    %c0_i32 = arith.constant 0 : i32
    %c0_i32_0 = arith.constant 0 : i32
    return %arg1, %c0_i32 : i32, i32
  }
  func.func @transform_2(%arg0: i32, %arg1: i32) -> (i32, i32) {
    %c0_i32 = arith.constant 0 : i32
    %c0_i32_0 = arith.constant 0 : i32
    return %arg0, %c0_i32 : i32, i32
  }
  func.func @transform_3(%arg0: i32, %arg1: i32) -> (i32, i32) {
    %c0_i32 = arith.constant 0 : i32
    %c0_i32_0 = arith.constant 0 : i32
    %c0_i32_1 = arith.constant 0 : i32
    return %c0_i32, %c0_i32_0 : i32, i32
  }
  func.func @transform_4(%arg0: i32, %arg1: i32) -> (i32, i32) {
    %c0_i32 = arith.constant 0 : i32
    %c0_i32_0 = arith.constant 0 : i32
    %c0_i32_1 = arith.constant 0 : i32
    return %c0_i32, %c0_i32_0 : i32, i32
  }
  func.func @transform_5(%arg0: i32, %arg1: i32) -> (i32, i32) {
    %c0_i32 = arith.constant 0 : i32
    %c0_i32_0 = arith.constant 0 : i32
    return %arg0, %c0_i32 : i32, i32
  }
}

</mosaic_0001>

<llo_original>
// kernel: sage_net_forward.2
$region0: #{sage_net_forward.2}
  #allocation0 [shape = 'u32[]', space=smem, size = 0x4, offset = 0x4, fixed_abs, tag = 'smem constant byte address 0x4 - core index']
  #allocation1 [shape = 'u32[144,128]{1,0:T(1,128)}', space=vmem, size = 0x12000, scoped, tag = 'internal scratch']
  #allocation2 [shape = 'f32[128,256]{1,0:T(8,128)}', space=vmem, size = 0x20000, scoped, tag = 'scratch operand']
  %s0 = inlined_call_operand.vmem [shape: bf16[128,128], index: 0, kind: input, shape index: {}]
  %s1 = inlined_call_operand.vmem [shape: bf16[128,128], index: 1, kind: input, shape index: {}, may-alias: {1,2}]
  %s2 = inlined_call_operand.vmem [shape: bf16[128,128], index: 2, kind: input, shape index: {}, may-alias: {1,2}]
  %s3 = inlined_call_operand.vmem [shape: f32[256,128], index: 3, kind: input, shape index: {}]
  %s4 = inlined_call_operand.vmem [shape: f32[1,128], index: 4, kind: input, shape index: {}]
  %s5 = inlined_call_operand.vmem [shape: bf16[128,128], index: 5, kind: output, shape index: {}]
  %s6 = sld [smem:[#allocation0]]
  $region42: #{sage_net_forward.2} parent=0
    _
  %s8 = ssub.s32 1, %s6
  %s9 = scalar_select 0, %s8, %s6
  // Predicated region
  $region2: #{sage_net_forward.2} parent=0 // pred_check
    _
  $region3: #{sage_net_forward.2} parent=0 // pred_check_branch
    %11 = sbr.rel (0) target = $region5
  $region4: #{sage_net_forward.2} parent=0 // pred_region
    _
  $region5: #{sage_net_forward.2} parent=0 // pred_fallthru
    _
  // Predicated region
  $region6: #{sage_net_forward.2} parent=0 // pred_check
    _
  $region7: #{sage_net_forward.2} parent=0 // pred_check_branch
    %13 = sbr.rel (0) target = $region9
  $region8: #{sage_net_forward.2} parent=0 // pred_region
    _
  $region9: #{sage_net_forward.2} parent=0 // pred_fallthru
    _
  // Predicated region
  $region10: #{sage_net_forward.2} parent=0 // pred_check
    _
  $region11: #{sage_net_forward.2} parent=0 // pred_check_branch
    %15 = sbr.rel (0) target = $region13
  $region12: #{sage_net_forward.2} parent=0 // pred_region
    _
  $region13: #{sage_net_forward.2} parent=0 // pred_fallthru
    _
  // Predicated region
  $region14: #{sage_net_forward.2} parent=0 // pred_check
    _
  $region15: #{sage_net_forward.2} parent=0 // pred_check_branch
    %17 = sbr.rel (0) target = $region17
  $region16: #{sage_net_forward.2} parent=0 // pred_region
    _
  $region17: #{sage_net_forward.2} parent=0 // pred_fallthru
    _
  // Predicated region
  $region18: #{sage_net_forward.2} parent=0 // pred_check
    _
  $region19: #{sage_net_forward.2} parent=0 // pred_check_branch
    %19 = sbr.rel (0) target = $region21
  $region20: #{sage_net_forward.2} parent=0 // pred_region
    _
  $region21: #{sage_net_forward.2} parent=0 // pred_fallthru
    _
  %v21 = vld [vmem:[%s0] sm:$0xf]
  %v22 = vld [vmem:[%s0 + $0x4] sm:$0xf]
  %v23 = vld [vmem:[%s0 + $0x8] sm:$0xf]
  %v24 = vld [vmem:[%s0 + $0xc] sm:$0xf]
  %v25 = vld [vmem:[%s0 + $0x10] sm:$0xf]
  %v26 = vld [vmem:[%s0 + $0x14] sm:$0xf]
  %v27 = vld [vmem:[%s0 + $0x18] sm:$0xf]
  %v28 = vld [vmem:[%s0 + $0x1c] sm:$0xf]
  %v29 = vld [vmem:[%s0 + $0x20] sm:$0xf]
  %v30 = vld [vmem:[%s0 + $0x24] sm:$0xf]
  %v31 = vld [vmem:[%s0 + $0x28] sm:$0xf]
  %v32 = vld [vmem:[%s0 + $0x2c] sm:$0xf]
  %v33 = vld [vmem:[%s0 + $0x30] sm:$0xf]
  %v34 = vld [vmem:[%s0 + $0x34] sm:$0xf]
  %v35 = vld [vmem:[%s0 + $0x38] sm:$0xf]
  %v36 = vld [vmem:[%s0 + $0x3c] sm:$0xf]
  %v37 = vld [vmem:[%s1] sm:$0xf]
  %v38 = vld [vmem:[%s1 + $0x4] sm:$0xf]
  %v39 = vld [vmem:[%s1 + $0x8] sm:$0xf]
  %v40 = vld [vmem:[%s1 + $0xc] sm:$0xf]
  %v41 = vld [vmem:[%s1 + $0x10] sm:$0xf]
  %v42 = vld [vmem:[%s1 + $0x14] sm:$0xf]
  %v43 = vld [vmem:[%s1 + $0x18] sm:$0xf]
  %v44 = vld [vmem:[%s1 + $0x1c] sm:$0xf]
  %v45 = vld [vmem:[%s1 + $0x20] sm:$0xf]
  %v46 = vld [vmem:[%s1 + $0x24] sm:$0xf]
  %v47 = vld [vmem:[%s1 + $0x28] sm:$0xf]
  %v48 = vld [vmem:[%s1 + $0x2c] sm:$0xf]
  %v49 = vld [vmem:[%s1 + $0x30] sm:$0xf]
  %v50 = vld [vmem:[%s1 + $0x34] sm:$0xf]
  %v51 = vld [vmem:[%s1 + $0x38] sm:$0xf]
  %v52 = vld [vmem:[%s1 + $0x3c] sm:$0xf]
  %v69 = vunpack.c.l.b16 %v21
  %v70 = vunpack.c.l.b16 %v22
  %v71 = vunpack.c.l.b16 %v23
  %v72 = vunpack.c.l.b16 %v24
  %v73 = vunpack.c.l.b16 %v25
  %v74 = vunpack.c.l.b16 %v26
  %v75 = vunpack.c.l.b16 %v27
  %v76 = vunpack.c.l.b16 %v28
  %v77 = vunpack.c.l.b16 %v29
  %v78 = vunpack.c.l.b16 %v30
  %v79 = vunpack.c.l.b16 %v31
  %v80 = vunpack.c.l.b16 %v32
  %v81 = vunpack.c.l.b16 %v33
  %v82 = vunpack.c.l.b16 %v34
  %v83 = vunpack.c.l.b16 %v35
  %v84 = vunpack.c.l.b16 %v36
  %v85 = vpack.c.b16 %v70, %v69
  %v86 = vpack.c.b16 %v72, %v71
  %v87 = vpack.c.b16 %v74, %v73
  %v88 = vpack.c.b16 %v76, %v75
  %v89 = vpack.c.b16 %v78, %v77
  %v90 = vpack.c.b16 %v80, %v79
  %v91 = vpack.c.b16 %v82, %v81
  %v92 = vpack.c.b16 %v84, %v83
  %v117 = vunpack.c.l.b16 %v37
  %v118 = vunpack.c.l.b16 %v38
  %v119 = vunpack.c.l.b16 %v39
  %v120 = vunpack.c.l.b16 %v40
  %v121 = vunpack.c.l.b16 %v41
  %v122 = vunpack.c.l.b16 %v42
  %v123 = vunpack.c.l.b16 %v43
  %v124 = vunpack.c.l.b16 %v44
  %v125 = vunpack.c.l.b16 %v45
  %v126 = vunpack.c.l.b16 %v46
  %v127 = vunpack.c.l.b16 %v47
  %v128 = vunpack.c.l.b16 %v48
  %v129 = vunpack.c.l.b16 %v49
  %v130 = vunpack.c.l.b16 %v50
  %v131 = vunpack.c.l.b16 %v51
  %v132 = vunpack.c.l.b16 %v52
  %v133 = vpack.c.b16 %v118, %v117
  %v134 = vpack.c.b16 %v120, %v119
  %v135 = vpack.c.b16 %v122, %v121
  %v136 = vpack.c.b16 %v124, %v123
  %v137 = vpack.c.b16 %v126, %v125
  %v138 = vpack.c.b16 %v128, %v127
  %v139 = vpack.c.b16 %v130, %v129
  %v140 = vpack.c.b16 %v132, %v131
  %149 = vmatprep.subr.bf16.mxu0 0
  %150 = vmatpush1.bf16.msra.mxu0 %v133
  %151 = vmatprep.subr.bf16.mxu0 0
  %152 = vmatpush1.bf16.msra.mxu0 %v134
  %153 = vmatprep.subr.bf16.mxu0 0
  %154 = vmatpush1.bf16.msra.mxu0 %v135
  %155 = vmatprep.subr.bf16.mxu0 0
  %156 = vmatpush1.bf16.msra.mxu0 %v136
  %157 = vmatprep.subr.bf16.mxu0 0
  %158 = vmatpush1.bf16.msra.mxu0 %v137
  %159 = vmatprep.subr.bf16.mxu0 0
  %160 = vmatpush1.bf16.msra.mxu0 %v138
  %161 = vmatprep.subr.bf16.mxu0 0
  %162 = vmatpush1.bf16.msra.mxu0 %v139
  %163 = vmatprep.subr.bf16.mxu0 0
  %164 = vmatpush1.bf16.msra.mxu0 %v140
  %165 = vmatprep.subr.bf16.mxu0 0
  %166 = vmatpush1.bf16.msra.mxu0 0
  %167 = vmatprep.subr.bf16.mxu0 0
  %168 = vmatpush1.bf16.msra.mxu0 0
  %169 = vmatprep.subr.bf16.mxu0 0
  %170 = vmatpush1.bf16.msra.mxu0 0
  %171 = vmatprep.subr.bf16.mxu0 0
  %172 = vmatpush1.bf16.msra.mxu0 0
  %173 = vmatprep.subr.bf16.mxu0 0
  %174 = vmatpush1.bf16.msra.mxu0 0
  %175 = vmatprep.subr.bf16.mxu0 0
  %176 = vmatpush1.bf16.msra.mxu0 0
  %177 = vmatprep.subr.bf16.mxu0 0
  %178 = vmatpush1.bf16.msra.mxu0 0
  %179 = vmatprep.subr.bf16.mxu0 0
  %180 = vmatpush1.bf16.msra.mxu0 0
  %181 = vmatprep.mubr.bf16.mxu0 0
  %182 = vmatmul.mubr.bf16.gmra.mrb[0].mxu0 %v85
  %v183 = vpop.f32.mrb[0].mxu0
  %v184 = vadd.f32 0.0, %v183
  %v185 = vpop.f32.mrb[0].mxu0
  %v186 = vpop.f32.mrb[0].mxu0
  %v187 = vadd.f32 0.0, %v186
  %v188 = vpop.f32.mrb[0].mxu0
  %189 = vmatprep.mubr.bf16.mxu0 0
  %190 = vmatmul.mubr.bf16.gmra.mrb[0].mxu0 %v86
  %v191 = vpop.f32.mrb[0].mxu0
  %v192 = vadd.f32 0.0, %v191
  %v193 = vpop.f32.mrb[0].mxu0
  %v194 = vpop.f32.mrb[0].mxu0
  %v195 = vadd.f32 0.0, %v194
  %v196 = vpop.f32.mrb[0].mxu0
  %197 = vmatprep.mubr.bf16.mxu0 0
  %198 = vmatmul.mubr.bf16.gmra.mrb[0].mxu0 %v87
  %v199 = vpop.f32.mrb[0].mxu0
  %v200 = vadd.f32 0.0, %v199
  %v201 = vpop.f32.mrb[0].mxu0
  %v202 = vpop.f32.mrb[0].mxu0
  %v203 = vadd.f32 0.0, %v202
  %v204 = vpop.f32.mrb[0].mxu0
  %205 = vmatprep.mubr.bf16.mxu0 0
  %206 = vmatmul.mubr.bf16.gmra.mrb[0].mxu0 %v88
  %v207 = vpop.f32.mrb[0].mxu0
  %v208 = vadd.f32 0.0, %v207
  %v209 = vpop.f32.mrb[0].mxu0
  %v210 = vpop.f32.mrb[0].mxu0
  %v211 = vadd.f32 0.0, %v210
  %v212 = vpop.f32.mrb[0].mxu0
  %213 = vmatprep.mubr.bf16.mxu0 0
  %214 = vmatmul.mubr.bf16.gmra.mrb[0].mxu0 %v89
  %v215 = vpop.f32.mrb[0].mxu0
  %v216 = vadd.f32 0.0, %v215
  %v217 = vpop.f32.mrb[0].mxu0
  %v218 = vpop.f32.mrb[0].mxu0
  %v219 = vadd.f32 0.0, %v218
  %v220 = vpop.f32.mrb[0].mxu0
  %221 = vmatprep.mubr.bf16.mxu0 0
  %222 = vmatmul.mubr.bf16.gmra.mrb[0].mxu0 %v90
  %v223 = vpop.f32.mrb[0].mxu0
  %v224 = vadd.f32 0.0, %v223
  %v225 = vpop.f32.mrb[0].mxu0
  %v226 = vpop.f32.mrb[0].mxu0
  %v227 = vadd.f32 0.0, %v226
  %v228 = vpop.f32.mrb[0].mxu0
  %229 = vmatprep.mubr.bf16.mxu0 0
  %230 = vmatmul.mubr.bf16.gmra.mrb[0].mxu0 %v91
  %v231 = vpop.f32.mrb[0].mxu0
  %v232 = vadd.f32 0.0, %v231
  %v233 = vpop.f32.mrb[0].mxu0
  %v234 = vpop.f32.mrb[0].mxu0
  %v235 = vadd.f32 0.0, %v234
  %v236 = vpop.f32.mrb[0].mxu0
  %237 = vmatprep.mubr.bf16.mxu0 0
  %238 = vmatmul.mubr.bf16.gmra.mrb[0].mxu0 %v92
  %v239 = vpop.f32.mrb[0].mxu0
  %v240 = vadd.f32 0.0, %v239
  %v241 = vpop.f32.mrb[0].mxu0
  %v242 = vpop.f32.mrb[0].mxu0
  %v243 = vadd.f32 0.0, %v242
  %v244 = vpop.f32.mrb[0].mxu0
  %245 = vdwg.mxu0
  %p246 = scmp.eq.s32.totalorder 0, 0
  // Predicated region
  $region22: #{sage_net_forward.2} parent=0 // pred_check
    %p247 = pneg %p246
  $region23: #{sage_net_forward.2} parent=0 // pred_check_branch
    %249 = sbr.rel (%p247) target = $region25
  $region24: #{sage_net_forward.2} parent=0 // pred_region
    %v250 = vld [vmem:[%s2] sm:$0xf]
    %v251 = vld [vmem:[%s2 + $0x4] sm:$0xf]
    %v252 = vld [vmem:[%s2 + $0x8] sm:$0xf]
    %v253 = vld [vmem:[%s2 + $0xc] sm:$0xf]
    %v254 = vld [vmem:[%s2 + $0x10] sm:$0xf]
    %v255 = vld [vmem:[%s2 + $0x14] sm:$0xf]
    %v256 = vld [vmem:[%s2 + $0x18] sm:$0xf]
    %v257 = vld [vmem:[%s2 + $0x1c] sm:$0xf]
    %v258 = vld [vmem:[%s2 + $0x20] sm:$0xf]
    %v259 = vld [vmem:[%s2 + $0x24] sm:$0xf]
    %v260 = vld [vmem:[%s2 + $0x28] sm:$0xf]
    %v261 = vld [vmem:[%s2 + $0x2c] sm:$0xf]
    %v262 = vld [vmem:[%s2 + $0x30] sm:$0xf]
    %v263 = vld [vmem:[%s2 + $0x34] sm:$0xf]
    %v264 = vld [vmem:[%s2 + $0x38] sm:$0xf]
    %v265 = vld [vmem:[%s2 + $0x3c] sm:$0xf]
    %v266 = vunpack.c.l.bf16 %v250
    %v267 = vunpack.c.l.bf16 %v251
    %v268 = vunpack.c.l.bf16 %v252
    %v269 = vunpack.c.l.bf16 %v253
    %v270 = vunpack.c.l.bf16 %v254
    %v271 = vunpack.c.l.bf16 %v255
    %v272 = vunpack.c.l.bf16 %v256
    %v273 = vunpack.c.l.bf16 %v257
    %v274 = vunpack.c.l.bf16 %v258
    %v275 = vunpack.c.l.bf16 %v259
    %v276 = vunpack.c.l.bf16 %v260
    %v277 = vunpack.c.l.bf16 %v261
    %v278 = vunpack.c.l.bf16 %v262
    %v279 = vunpack.c.l.bf16 %v263
    %v280 = vunpack.c.l.bf16 %v264
    %v281 = vunpack.c.l.bf16 %v265
    %282 = vst [vmem:[#allocation2] sm:$0xff] %v266
    %283 = vst [vmem:[#allocation2 + $0x10] sm:$0xff] %v267
    %284 = vst [vmem:[#allocation2 + $0x20] sm:$0xff] %v268
    %285 = vst [vmem:[#allocation2 + $0x30] sm:$0xff] %v269
    %286 = vst [vmem:[#allocation2 + $0x40] sm:$0xff] %v270
    %287 = vst [vmem:[#allocation2 + $0x50] sm:$0xff] %v271
    %288 = vst [vmem:[#allocation2 + $0x60] sm:$0xff] %v272
    %289 = vst [vmem:[#allocation2 + $0x70] sm:$0xff] %v273
    %290 = vst [vmem:[#allocation2 + $0x80] sm:$0xff] %v274
    %291 = vst [vmem:[#allocation2 + $0x90] sm:$0xff] %v275
    %292 = vst [vmem:[#allocation2 + $0xa0] sm:$0xff] %v276
    %293 = vst [vmem:[#allocation2 + $0xb0] sm:$0xff] %v277
    %294 = vst [vmem:[#allocation2 + $0xc0] sm:$0xff] %v278
    %295 = vst [vmem:[#allocation2 + $0xd0] sm:$0xff] %v279
    %296 = vst [vmem:[#allocation2 + $0xe0] sm:$0xff] %v280
    %297 = vst [vmem:[#allocation2 + $0xf0] sm:$0xff] %v281
    %298 = vst [vmem:[#allocation2 + $0x8] sm:$0xff] %v184
    %299 = vst [vmem:[#allocation2 + $0x18] sm:$0xff] %v187
    %300 = vst [vmem:[#allocation2 + $0x28] sm:$0xff] %v192
    %301 = vst [vmem:[#allocation2 + $0x38] sm:$0xff] %v195
    %302 = vst [vmem:[#allocation2 + $0x48] sm:$0xff] %v200
    %303 = vst [vmem:[#allocation2 + $0x58] sm:$0xff] %v203
    %304 = vst [vmem:[#allocation2 + $0x68] sm:$0xff] %v208
    %305 = vst [vmem:[#allocation2 + $0x78] sm:$0xff] %v211
    %306 = vst [vmem:[#allocation2 + $0x88] sm:$0xff] %v216
    %307 = vst [vmem:[#allocation2 + $0x98] sm:$0xff] %v219
    %308 = vst [vmem:[#allocation2 + $0xa8] sm:$0xff] %v224
    %309 = vst [vmem:[#allocation2 + $0xb8] sm:$0xff] %v227
    %310 = vst [vmem:[#allocation2 + $0xc8] sm:$0xff] %v232
    %311 = vst [vmem:[#allocation2 + $0xd8] sm:$0xff] %v235
    %312 = vst [vmem:[#allocation2 + $0xe8] sm:$0xff] %v240
    %313 = vst [vmem:[#allocation2 + $0xf8] sm:$0xff] %v243
  $region25: #{sage_net_forward.2} parent=0 // pred_fallthru
    _
  %p314 = scmp.ne.s32.totalorder 0, 0
  // Predicated region
  $region26: #{sage_net_forward.2} parent=0 // pred_check
    %p315 = pneg %p314
  $region27: #{sage_net_forward.2} parent=0 // pred_check_branch
    %317 = sbr.rel (%p315) target = $region29
  $region28: #{sage_net_forward.2} parent=0 // pred_region
    %v318 = vld [vmem:[#allocation2 + $0x8] sm:$0xff]
    %v319 = vld [vmem:[#allocation2 + $0x18] sm:$0xff]
    %v320 = vld [vmem:[#allocation2 + $0x28] sm:$0xff]
    %v321 = vld [vmem:[#allocation2 + $0x38] sm:$0xff]
    %v322 = vld [vmem:[#allocation2 + $0x48] sm:$0xff]
    %v323 = vld [vmem:[#allocation2 + $0x58] sm:$0xff]
    %v324 = vld [vmem:[#allocation2 + $0x68] sm:$0xff]
    %v325 = vld [vmem:[#allocation2 + $0x78] sm:$0xff]
    %v326 = vld [vmem:[#allocation2 + $0x88] sm:$0xff]
    %v327 = vld [vmem:[#allocation2 + $0x98] sm:$0xff]
    %v328 = vld [vmem:[#allocation2 + $0xa8] sm:$0xff]
    %v329 = vld [vmem:[#allocation2 + $0xb8] sm:$0xff]
    %v330 = vld [vmem:[#allocation2 + $0xc8] sm:$0xff]
    %v331 = vld [vmem:[#allocation2 + $0xd8] sm:$0xff]
    %v332 = vld [vmem:[#allocation2 + $0xe8] sm:$0xff]
    %v333 = vld [vmem:[#allocation2 + $0xf8] sm:$0xff]
    %v334 = vadd.f32 %v318, %v184
    %v335 = vadd.f32 %v319, %v187
    %v336 = vadd.f32 %v320, %v192
    %v337 = vadd.f32 %v321, %v195
    %v338 = vadd.f32 %v322, %v200
    %v339 = vadd.f32 %v323, %v203
    %v340 = vadd.f32 %v324, %v208
    %v341 = vadd.f32 %v325, %v211
    %v342 = vadd.f32 %v326, %v216
    %v343 = vadd.f32 %v327, %v219
    %v344 = vadd.f32 %v328, %v224
    %v345 = vadd.f32 %v329, %v227
    %v346 = vadd.f32 %v330, %v232
    %v347 = vadd.f32 %v331, %v235
    %v348 = vadd.f32 %v332, %v240
    %v349 = vadd.f32 %v333, %v243
    %350 = vst [vmem:[#allocation2 + $0x8] sm:$0xff] %v334
    %351 = vst [vmem:[#allocation2 + $0x18] sm:$0xff] %v335
    %352 = vst [vmem:[#allocation2 + $0x28] sm:$0xff] %v336
    %353 = vst [vmem:[#allocation2 + $0x38] sm:$0xff] %v337
    %354 = vst [vmem:[#allocation2 + $0x48] sm:$0xff] %v338
    %355 = vst [vmem:[#allocation2 + $0x58] sm:$0xff] %v339
    %356 = vst [vmem:[#allocation2 + $0x68] sm:$0xff] %v340
    %357 = vst [vmem:[#allocation2 + $0x78] sm:$0xff] %v341
    %358 = vst [vmem:[#allocation2 + $0x88] sm:$0xff] %v342
    %359 = vst [vmem:[#allocation2 + $0x98] sm:$0xff] %v343
    %360 = vst [vmem:[#allocation2 + $0xa8] sm:$0xff] %v344
    %361 = vst [vmem:[#allocation2 + $0xb8] sm:$0xff] %v345
    %362 = vst [vmem:[#allocation2 + $0xc8] sm:$0xff] %v346
    %363 = vst [vmem:[#allocation2 + $0xd8] sm:$0xff] %v347
    %364 = vst [vmem:[#allocation2 + $0xe8] sm:$0xff] %v348
    %365 = vst [vmem:[#allocation2 + $0xf8] sm:$0xff] %v349
  $region29: #{sage_net_forward.2} parent=0 // pred_fallthru
    _
  // Predicated region
  $region30: #{sage_net_forward.2} parent=0 // pred_check
    %p366 = pneg %p246
  $region31: #{sage_net_forward.2} parent=0 // pred_check_branch
    %368 = sbr.rel (%p366) target = $region33
  $region32: #{sage_net_forward.2} parent=0 // pred_region
    %v369 = vld [vmem:[#allocation2] sm:$0xff]
    %v370 = vld [vmem:[#allocation2 + $0x8] sm:$0xff]
    %v371 = vld [vmem:[#allocation2 + $0x10] sm:$0xff]
    %v372 = vld [vmem:[#allocation2 + $0x18] sm:$0xff]
    %v373 = vld [vmem:[#allocation2 + $0x20] sm:$0xff]
    %v374 = vld [vmem:[#allocation2 + $0x28] sm:$0xff]
    %v375 = vld [vmem:[#allocation2 + $0x30] sm:$0xff]
    %v376 = vld [vmem:[#allocation2 + $0x38] sm:$0xff]
    %v377 = vld [vmem:[#allocation2 + $0x40] sm:$0xff]
    %v378 = vld [vmem:[#allocation2 + $0x48] sm:$0xff]
    %v379 = vld [vmem:[#allocation2 + $0x50] sm:$0xff]
    %v380 = vld [vmem:[#allocation2 + $0x58] sm:$0xff]
    %v381 = vld [vmem:[#allocation2 + $0x60] sm:$0xff]
    %v382 = vld [vmem:[#allocation2 + $0x68] sm:$0xff]
    %v383 = vld [vmem:[#allocation2 + $0x70] sm:$0xff]
    %v384 = vld [vmem:[#allocation2 + $0x78] sm:$0xff]
    %v385 = vld [vmem:[#allocation2 + $0x80] sm:$0xff]
    %v386 = vld [vmem:[#allocation2 + $0x88] sm:$0xff]
    %v387 = vld [vmem:[#allocation2 + $0x90] sm:$0xff]
    %v388 = vld [vmem:[#allocation2 + $0x98] sm:$0xff]
    %v389 = vld [vmem:[#allocation2 + $0xa0] sm:$0xff]
    %v390 = vld [vmem:[#allocation2 + $0xa8] sm:$0xff]
    %v391 = vld [vmem:[#allocation2 + $0xb0] sm:$0xff]
    %v392 = vld [vmem:[#allocation2 + $0xb8] sm:$0xff]
    %v393 = vld [vmem:[#allocation2 + $0xc0] sm:$0xff]
    %v394 = vld [vmem:[#allocation2 + $0xc8] sm:$0xff]
    %v395 = vld [vmem:[#allocation2 + $0xd0] sm:$0xff]
    %v396 = vld [vmem:[#allocation2 + $0xd8] sm:$0xff]
    %v397 = vld [vmem:[#allocation2 + $0xe0] sm:$0xff]
    %v398 = vld [vmem:[#allocation2 + $0xe8] sm:$0xff]
    %v399 = vld [vmem:[#allocation2 + $0xf0] sm:$0xff]
    %v400 = vld [vmem:[#allocation2 + $0xf8] sm:$0xff]
    %v401 = vld [vmem:[%s3] sm:$0xff]
    %v402 = vld [vmem:[%s3 + $0x8] sm:$0xff]
    %v403 = vld [vmem:[%s3 + $0x10] sm:$0xff]
    %v404 = vld [vmem:[%s3 + $0x18] sm:$0xff]
    %v405 = vld [vmem:[%s3 + $0x20] sm:$0xff]
    %v406 = vld [vmem:[%s3 + $0x28] sm:$0xff]
    %v407 = vld [vmem:[%s3 + $0x30] sm:$0xff]
    %v408 = vld [vmem:[%s3 + $0x38] sm:$0xff]
    %v409 = vld [vmem:[%s3 + $0x40] sm:$0xff]
    %v410 = vld [vmem:[%s3 + $0x48] sm:$0xff]
    %v411 = vld [vmem:[%s3 + $0x50] sm:$0xff]
    %v412 = vld [vmem:[%s3 + $0x58] sm:$0xff]
    %v413 = vld [vmem:[%s3 + $0x60] sm:$0xff]
    %v414 = vld [vmem:[%s3 + $0x68] sm:$0xff]
    %v415 = vld [vmem:[%s3 + $0x70] sm:$0xff]
    %v416 = vld [vmem:[%s3 + $0x78] sm:$0xff]
    %v417 = vld [vmem:[%s3 + $0x80] sm:$0xff]
    %v418 = vld [vmem:[%s3 + $0x88] sm:$0xff]
    %v419 = vld [vmem:[%s3 + $0x90] sm:$0xff]
    %v420 = vld [vmem:[%s3 + $0x98] sm:$0xff]
    %v421 = vld [vmem:[%s3 + $0xa0] sm:$0xff]
    %v422 = vld [vmem:[%s3 + $0xa8] sm:$0xff]
    %v423 = vld [vmem:[%s3 + $0xb0] sm:$0xff]
    %v424 = vld [vmem:[%s3 + $0xb8] sm:$0xff]
    %v425 = vld [vmem:[%s3 + $0xc0] sm:$0xff]
    %v426 = vld [vmem:[%s3 + $0xc8] sm:$0xff]
    %v427 = vld [vmem:[%s3 + $0xd0] sm:$0xff]
    %v428 = vld [vmem:[%s3 + $0xd8] sm:$0xff]
    %v429 = vld [vmem:[%s3 + $0xe0] sm:$0xff]
    %v430 = vld [vmem:[%s3 + $0xe8] sm:$0xff]
    %v431 = vld [vmem:[%s3 + $0xf0] sm:$0xff]
    %v432 = vld [vmem:[%s3 + $0xf8] sm:$0xff]
    %v433 = vld [vmem:[%s4] sm:$0x1]
    %v435 = vlaneseq
    %v436 = vshrl.u32 %v435, 7
    %v437 = vsub.s32 0, %v436
    %v438 = vrot.slane %v433, %v437
    %440 = vmatprep.subr.mxu0 0.0
    %441 = vmatpush1.msra.mxu0 %v401
    %442 = vmatprep.subr.mxu0 0.0
    %443 = vmatpush1.msra.mxu0 %v402
    %444 = vmatprep.subr.mxu0 0.0
    %445 = vmatpush1.msra.mxu0 %v403
    %446 = vmatprep.subr.mxu0 0.0
    %447 = vmatpush1.msra.mxu0 %v404
    %448 = vmatprep.subr.mxu0 0.0
    %449 = vmatpush1.msra.mxu0 %v405
    %450 = vmatprep.subr.mxu0 0.0
    %451 = vmatpush1.msra.mxu0 %v406
    %452 = vmatprep.subr.mxu0 0.0
    %453 = vmatpush1.msra.mxu0 %v407
    %454 = vmatprep.subr.mxu0 0.0
    %455 = vmatpush1.msra.mxu0 %v408
    %456 = vmatprep.subr.mxu0 0.0
    %457 = vmatpush1.msra.mxu0 %v409
    %458 = vmatprep.subr.mxu0 0.0
    %459 = vmatpush1.msra.mxu0 %v410
    %460 = vmatprep.subr.mxu0 0.0
    %461 = vmatpush1.msra.mxu0 %v411
    %462 = vmatprep.subr.mxu0 0.0
    %463 = vmatpush1.msra.mxu0 %v412
    %464 = vmatprep.subr.mxu0 0.0
    %465 = vmatpush1.msra.mxu0 %v413
    %466 = vmatprep.subr.mxu0 0.0
    %467 = vmatpush1.msra.mxu0 %v414
    %468 = vmatprep.subr.mxu0 0.0
    %469 = vmatpush1.msra.mxu0 %v415
    %470 = vmatprep.subr.mxu0 0.0
    %471 = vmatpush1.msra.mxu0 %v416
    %472 = vmatprep.subr.mxu0 0.0
    %473 = vmatpush1.msra.mxu0 %v417
    %474 = vmatprep.subr.mxu0 0.0
    %475 = vmatpush1.msra.mxu0 %v418
    %476 = vmatprep.subr.mxu0 0.0
    %477 = vmatpush1.msra.mxu0 %v419
    %478 = vmatprep.subr.mxu0 0.0
    %479 = vmatpush1.msra.mxu0 %v420
    %480 = vmatprep.subr.mxu0 0.0
    %481 = vmatpush1.msra.mxu0 %v421
    %482 = vmatprep.subr.mxu0 0.0
    %483 = vmatpush1.msra.mxu0 %v422
    %484 = vmatprep.subr.mxu0 0.0
    %485 = vmatpush1.msra.mxu0 %v423
    %486 = vmatprep.subr.mxu0 0.0
    %487 = vmatpush1.msra.mxu0 %v424
    %488 = vmatprep.subr.mxu0 0.0
    %489 = vmatpush1.msra.mxu0 %v425
    %490 = vmatprep.subr.mxu0 0.0
    %491 = vmatpush1.msra.mxu0 %v426
    %492 = vmatprep.subr.mxu0 0.0
    %493 = vmatpush1.msra.mxu0 %v427
    %494 = vmatprep.subr.mxu0 0.0
    %495 = vmatpush1.msra.mxu0 %v428
    %496 = vmatprep.subr.mxu0 0.0
    %497 = vmatpush1.msra.mxu0 %v429
    %498 = vmatprep.subr.mxu0 0.0
    %499 = vmatpush1.msra.mxu0 %v430
    %500 = vmatprep.subr.mxu0 0.0
    %501 = vmatpush1.msra.mxu0 %v431
    %502 = vmatprep.subr.mxu0 0.0
    %503 = vmatpush1.msra.mxu0 %v432
    %504 = vmatprep.mubr.f32.mxu0 %v370
    %505 = vmatmul.mubr.f32.gmra.mrb[0].mxu0 %v369
    %v506 = vpop.f32.mrb[0].mxu0
    %v507 = vadd.f32 %v438, %v506
    %v508 = vpop.f32.mrb[0].mxu0
    %509 = vmatprep.mubr.f32.mxu0 %v372
    %510 = vmatmul.mubr.f32.gmra.mrb[0].mxu0 %v371
    %v511 = vpop.f32.mrb[0].mxu0
    %v512 = vadd.f32 %v438, %v511
    %v513 = vpop.f32.mrb[0].mxu0
    %514 = vmatprep.mubr.f32.mxu0 %v374
    %515 = vmatmul.mubr.f32.gmra.mrb[0].mxu0 %v373
    %v516 = vpop.f32.mrb[0].mxu0
    %v517 = vadd.f32 %v438, %v516
    %v518 = vpop.f32.mrb[0].mxu0
    %519 = vmatprep.mubr.f32.mxu0 %v376
    %520 = vmatmul.mubr.f32.gmra.mrb[0].mxu0 %v375
    %v521 = vpop.f32.mrb[0].mxu0
    %v522 = vadd.f32 %v438, %v521
    %v523 = vpop.f32.mrb[0].mxu0
    %524 = vmatprep.mubr.f32.mxu0 %v378
    %525 = vmatmul.mubr.f32.gmra.mrb[0].mxu0 %v377
    %v526 = vpop.f32.mrb[0].mxu0
    %v527 = vadd.f32 %v438, %v526
    %v528 = vpop.f32.mrb[0].mxu0
    %529 = vmatprep.mubr.f32.mxu0 %v380
    %530 = vmatmul.mubr.f32.gmra.mrb[0].mxu0 %v379
    %v531 = vpop.f32.mrb[0].mxu0
    %v532 = vadd.f32 %v438, %v531
    %v533 = vpop.f32.mrb[0].mxu0
    %534 = vmatprep.mubr.f32.mxu0 %v382
    %535 = vmatmul.mubr.f32.gmra.mrb[0].mxu0 %v381
    %v536 = vpop.f32.mrb[0].mxu0
    %v537 = vadd.f32 %v438, %v536
    %v538 = vpop.f32.mrb[0].mxu0
    %539 = vmatprep.mubr.f32.mxu0 %v384
    %540 = vmatmul.mubr.f32.gmra.mrb[0].mxu0 %v383
    %v541 = vpop.f32.mrb[0].mxu0
    %v542 = vadd.f32 %v438, %v541
    %v543 = vpop.f32.mrb[0].mxu0
    %544 = vmatprep.mubr.f32.mxu0 %v386
    %545 = vmatmul.mubr.f32.gmra.mrb[0].mxu0 %v385
    %v546 = vpop.f32.mrb[0].mxu0
    %v547 = vadd.f32 %v438, %v546
    %v548 = vpop.f32.mrb[0].mxu0
    %549 = vmatprep.mubr.f32.mxu0 %v388
    %550 = vmatmul.mubr.f32.gmra.mrb[0].mxu0 %v387
    %v551 = vpop.f32.mrb[0].mxu0
    %v552 = vadd.f32 %v438, %v551
    %v553 = vpop.f32.mrb[0].mxu0
    %554 = vmatprep.mubr.f32.mxu0 %v390
    %555 = vmatmul.mubr.f32.gmra.mrb[0].mxu0 %v389
    %v556 = vpop.f32.mrb[0].mxu0
    %v557 = vadd.f32 %v438, %v556
    %v558 = vpop.f32.mrb[0].mxu0
    %559 = vmatprep.mubr.f32.mxu0 %v392
    %560 = vmatmul.mubr.f32.gmra.mrb[0].mxu0 %v391
    %v561 = vpop.f32.mrb[0].mxu0
    %v562 = vadd.f32 %v438, %v561
    %v563 = vpop.f32.mrb[0].mxu0
    %564 = vmatprep.mubr.f32.mxu0 %v394
    %565 = vmatmul.mubr.f32.gmra.mrb[0].mxu0 %v393
    %v566 = vpop.f32.mrb[0].mxu0
    %v567 = vadd.f32 %v438, %v566
    %v568 = vpop.f32.mrb[0].mxu0
    %569 = vmatprep.mubr.f32.mxu0 %v396
    %570 = vmatmul.mubr.f32.gmra.mrb[0].mxu0 %v395
    %v571 = vpop.f32.mrb[0].mxu0
    %v572 = vadd.f32 %v438, %v571
    %v573 = vpop.f32.mrb[0].mxu0
    %574 = vmatprep.mubr.f32.mxu0 %v398
    %575 = vmatmul.mubr.f32.gmra.mrb[0].mxu0 %v397
    %v576 = vpop.f32.mrb[0].mxu0
    %v577 = vadd.f32 %v438, %v576
    %v578 = vpop.f32.mrb[0].mxu0
    %579 = vmatprep.mubr.f32.mxu0 %v400
    %580 = vmatmul.mubr.f32.gmra.mrb[0].mxu0 %v399
    %v581 = vpop.f32.mrb[0].mxu0
    %v582 = vadd.f32 %v438, %v581
    %v583 = vpop.f32.mrb[0].mxu0
    %584 = vdwg.mxu0
    %v585 = vmax.f32 %v507, 0.0
    %v586 = vmax.f32 %v512, 0.0
    %v587 = vmax.f32 %v517, 0.0
    %v588 = vmax.f32 %v522, 0.0
    %v589 = vmax.f32 %v527, 0.0
    %v590 = vmax.f32 %v532, 0.0
    %v591 = vmax.f32 %v537, 0.0
    %v592 = vmax.f32 %v542, 0.0
    %v593 = vmax.f32 %v547, 0.0
    %v594 = vmax.f32 %v552, 0.0
    %v595 = vmax.f32 %v557, 0.0
    %v596 = vmax.f32 %v562, 0.0
    %v597 = vmax.f32 %v567, 0.0
    %v598 = vmax.f32 %v572, 0.0
    %v599 = vmax.f32 %v577, 0.0
    %v600 = vmax.f32 %v582, 0.0
    %v601 = vpack.c.bf16 %v586, %v585
    %v602 = vpack.c.bf16 %v588, %v587
    %v603 = vpack.c.bf16 %v590, %v589
    %v604 = vpack.c.bf16 %v592, %v591
    %v605 = vpack.c.bf16 %v594, %v593
    %v606 = vpack.c.bf16 %v596, %v595
    %v607 = vpack.c.bf16 %v598, %v597
    %v608 = vpack.c.bf16 %v600, %v599
    %v617 = vunpack.c.l.b16 %v601
    %v618 = vunpack.c.h.b16 %v601
    %v619 = vunpack.c.l.b16 %v602
    %v620 = vunpack.c.h.b16 %v602
    %v621 = vunpack.c.l.b16 %v603
    %v622 = vunpack.c.h.b16 %v603
    %v623 = vunpack.c.l.b16 %v604
    %v624 = vunpack.c.h.b16 %v604
    %v625 = vunpack.c.l.b16 %v605
    %v626 = vunpack.c.h.b16 %v605
    %v627 = vunpack.c.l.b16 %v606
    %v628 = vunpack.c.h.b16 %v606
    %v629 = vunpack.c.l.b16 %v607
    %v630 = vunpack.c.h.b16 %v607
    %v631 = vunpack.c.l.b16 %v608
    %v632 = vunpack.c.h.b16 %v608
    %v633 = vpack.c.b16 %v617, %v617
    %v634 = vpack.c.b16 %v618, %v618
    %v635 = vpack.c.b16 %v619, %v619
    %v636 = vpack.c.b16 %v620, %v620
    %v637 = vpack.c.b16 %v621, %v621
    %v638 = vpack.c.b16 %v622, %v622
    %v639 = vpack.c.b16 %v623, %v623
    %v640 = vpack.c.b16 %v624, %v624
    %v641 = vpack.c.b16 %v625, %v625
    %v642 = vpack.c.b16 %v626, %v626
    %v643 = vpack.c.b16 %v627, %v627
    %v644 = vpack.c.b16 %v628, %v628
    %v645 = vpack.c.b16 %v629, %v629
    %v646 = vpack.c.b16 %v630, %v630
    %v647 = vpack.c.b16 %v631, %v631
    %v648 = vpack.c.b16 %v632, %v632
    %665 = vst [vmem:[%s5] sm:$0xf] %v633
    %666 = vst [vmem:[%s5 + $0x4] sm:$0xf] %v634
    %667 = vst [vmem:[%s5 + $0x8] sm:$0xf] %v635
    %668 = vst [vmem:[%s5 + $0xc] sm:$0xf] %v636
    %669 = vst [vmem:[%s5 + $0x10] sm:$0xf] %v637
    %670 = vst [vmem:[%s5 + $0x14] sm:$0xf] %v638
    %671 = vst [vmem:[%s5 + $0x18] sm:$0xf] %v639
    %672 = vst [vmem:[%s5 + $0x1c] sm:$0xf] %v640
    %673 = vst [vmem:[%s5 + $0x20] sm:$0xf] %v641
    %674 = vst [vmem:[%s5 + $0x24] sm:$0xf] %v642
    %675 = vst [vmem:[%s5 + $0x28] sm:$0xf] %v643
    %676 = vst [vmem:[%s5 + $0x2c] sm:$0xf] %v644
    %677 = vst [vmem:[%s5 + $0x30] sm:$0xf] %v645
    %678 = vst [vmem:[%s5 + $0x34] sm:$0xf] %v646
    %679 = vst [vmem:[%s5 + $0x38] sm:$0xf] %v647
    %680 = vst [vmem:[%s5 + $0x3c] sm:$0xf] %v648
  $region33: #{sage_net_forward.2} parent=0 // pred_fallthru
    _
  // Predicated region
  $region34: #{sage_net_forward.2} parent=0 // pred_check
    _
  $region35: #{sage_net_forward.2} parent=0 // pred_check_branch
    %682 = sbr.rel (0) target = $region37
  $region36: #{sage_net_forward.2} parent=0 // pred_region
    _
  $region37: #{sage_net_forward.2} parent=0 // pred_fallthru
    _
  // Predicated region
  $region38: #{sage_net_forward.2} parent=0 // pred_check
    _
  $region39: #{sage_net_forward.2} parent=0 // pred_check_branch
    %684 = sbr.rel (0) target = $region41
  $region40: #{sage_net_forward.2} parent=0 // pred_region
    _
  $region41: #{sage_net_forward.2} parent=0 // pred_fallthru
    _

// kernel: sage_net_forward.3
$region0: #{sage_net_forward.3}
  #allocation0 [shape = 'u32[]', space=smem, size = 0x4, offset = 0x4, fixed_abs, tag = 'smem constant byte address 0x4 - core index']
  #allocation1 [shape = 'u32[144,128]{1,0:T(1,128)}', space=vmem, size = 0x12000, scoped, tag = 'internal scratch']
  #allocation2 [shape = 'f32[128,256]{1,0:T(8,128)}', space=vmem, size = 0x20000, scoped, tag = 'scratch operand']
  %s0 = inlined_call_operand.vmem [shape: bf16[128,128], index: 0, kind: input, shape index: {}]
  %s1 = inlined_call_operand.vmem [shape: bf16[128,128], index: 1, kind: input, shape index: {}, may-alias: {1,2}]
  %s2 = inlined_call_operand.vmem [shape: bf16[128,128], index: 2, kind: input, shape index: {}, may-alias: {1,2}]
  %s3 = inlined_call_operand.vmem [shape: f32[256,128], index: 3, kind: input, shape index: {}]
  %s4 = inlined_call_operand.vmem [shape: f32[1,128], index: 4, kind: input, shape index: {}]
  %s5 = inlined_call_operand.vmem [shape: f32[128,128], index: 5, kind: output, shape index: {}]
  %s6 = sld [smem:[#allocation0]]
  $region42: #{sage_net_forward.3} parent=0
    _
  %s8 = ssub.s32 1, %s6
  %s9 = scalar_select 0, %s8, %s6
  // Predicated region
  $region2: #{sage_net_forward.3} parent=0 // pred_check
    _
  $region3: #{sage_net_forward.3} parent=0 // pred_check_branch
    %11 = sbr.rel (0) target = $region5
  $region4: #{sage_net_forward.3} parent=0 // pred_region
    _
  $region5: #{sage_net_forward.3} parent=0 // pred_fallthru
    _
  // Predicated region
  $region6: #{sage_net_forward.3} parent=0 // pred_check
    _
  $region7: #{sage_net_forward.3} parent=0 // pred_check_branch
    %13 = sbr.rel (0) target = $region9
  $region8: #{sage_net_forward.3} parent=0 // pred_region
    _
  $region9: #{sage_net_forward.3} parent=0 // pred_fallthru
    _
  // Predicated region
  $region10: #{sage_net_forward.3} parent=0 // pred_check
    _
  $region11: #{sage_net_forward.3} parent=0 // pred_check_branch
    %15 = sbr.rel (0) target = $region13
  $region12: #{sage_net_forward.3} parent=0 // pred_region
    _
  $region13: #{sage_net_forward.3} parent=0 // pred_fallthru
    _
  // Predicated region
  $region14: #{sage_net_forward.3} parent=0 // pred_check
    _
  $region15: #{sage_net_forward.3} parent=0 // pred_check_branch
    %17 = sbr.rel (0) target = $region17
  $region16: #{sage_net_forward.3} parent=0 // pred_region
    _
  $region17: #{sage_net_forward.3} parent=0 // pred_fallthru
    _
  // Predicated region
  $region18: #{sage_net_forward.3} parent=0 // pred_check
    _
  $region19: #{sage_net_forward.3} parent=0 // pred_check_branch
    %19 = sbr.rel (0) target = $region21
  $region20: #{sage_net_forward.3} parent=0 // pred_region
    _
  $region21: #{sage_net_forward.3} parent=0 // pred_fallthru
    _
  %v21 = vld [vmem:[%s0] sm:$0xf]
  %v22 = vld [vmem:[%s0 + $0x4] sm:$0xf]
  %v23 = vld [vmem:[%s0 + $0x8] sm:$0xf]
  %v24 = vld [vmem:[%s0 + $0xc] sm:$0xf]
  %v25 = vld [vmem:[%s0 + $0x10] sm:$0xf]
  %v26 = vld [vmem:[%s0 + $0x14] sm:$0xf]
  %v27 = vld [vmem:[%s0 + $0x18] sm:$0xf]
  %v28 = vld [vmem:[%s0 + $0x1c] sm:$0xf]
  %v29 = vld [vmem:[%s0 + $0x20] sm:$0xf]
  %v30 = vld [vmem:[%s0 + $0x24] sm:$0xf]
  %v31 = vld [vmem:[%s0 + $0x28] sm:$0xf]
  %v32 = vld [vmem:[%s0 + $0x2c] sm:$0xf]
  %v33 = vld [vmem:[%s0 + $0x30] sm:$0xf]
  %v34 = vld [vmem:[%s0 + $0x34] sm:$0xf]
  %v35 = vld [vmem:[%s0 + $0x38] sm:$0xf]
  %v36 = vld [vmem:[%s0 + $0x3c] sm:$0xf]
  %v37 = vld [vmem:[%s1] sm:$0xf]
  %v38 = vld [vmem:[%s1 + $0x4] sm:$0xf]
  %v39 = vld [vmem:[%s1 + $0x8] sm:$0xf]
  %v40 = vld [vmem:[%s1 + $0xc] sm:$0xf]
  %v41 = vld [vmem:[%s1 + $0x10] sm:$0xf]
  %v42 = vld [vmem:[%s1 + $0x14] sm:$0xf]
  %v43 = vld [vmem:[%s1 + $0x18] sm:$0xf]
  %v44 = vld [vmem:[%s1 + $0x1c] sm:$0xf]
  %v45 = vld [vmem:[%s1 + $0x20] sm:$0xf]
  %v46 = vld [vmem:[%s1 + $0x24] sm:$0xf]
  %v47 = vld [vmem:[%s1 + $0x28] sm:$0xf]
  %v48 = vld [vmem:[%s1 + $0x2c] sm:$0xf]
  %v49 = vld [vmem:[%s1 + $0x30] sm:$0xf]
  %v50 = vld [vmem:[%s1 + $0x34] sm:$0xf]
  %v51 = vld [vmem:[%s1 + $0x38] sm:$0xf]
  %v52 = vld [vmem:[%s1 + $0x3c] sm:$0xf]
  %v69 = vunpack.c.l.b16 %v21
  %v70 = vunpack.c.l.b16 %v22
  %v71 = vunpack.c.l.b16 %v23
  %v72 = vunpack.c.l.b16 %v24
  %v73 = vunpack.c.l.b16 %v25
  %v74 = vunpack.c.l.b16 %v26
  %v75 = vunpack.c.l.b16 %v27
  %v76 = vunpack.c.l.b16 %v28
  %v77 = vunpack.c.l.b16 %v29
  %v78 = vunpack.c.l.b16 %v30
  %v79 = vunpack.c.l.b16 %v31
  %v80 = vunpack.c.l.b16 %v32
  %v81 = vunpack.c.l.b16 %v33
  %v82 = vunpack.c.l.b16 %v34
  %v83 = vunpack.c.l.b16 %v35
  %v84 = vunpack.c.l.b16 %v36
  %v85 = vpack.c.b16 %v70, %v69
  %v86 = vpack.c.b16 %v72, %v71
  %v87 = vpack.c.b16 %v74, %v73
  %v88 = vpack.c.b16 %v76, %v75
  %v89 = vpack.c.b16 %v78, %v77
  %v90 = vpack.c.b16 %v80, %v79
  %v91 = vpack.c.b16 %v82, %v81
  %v92 = vpack.c.b16 %v84, %v83
  %v117 = vunpack.c.l.b16 %v37
  %v118 = vunpack.c.l.b16 %v38
  %v119 = vunpack.c.l.b16 %v39
  %v120 = vunpack.c.l.b16 %v40
  %v121 = vunpack.c.l.b16 %v41
  %v122 = vunpack.c.l.b16 %v42
  %v123 = vunpack.c.l.b16 %v43
  %v124 = vunpack.c.l.b16 %v44
  %v125 = vunpack.c.l.b16 %v45
  %v126 = vunpack.c.l.b16 %v46
  %v127 = vunpack.c.l.b16 %v47
  %v128 = vunpack.c.l.b16 %v48
  %v129 = vunpack.c.l.b16 %v49
  %v130 = vunpack.c.l.b16 %v50
  %v131 = vunpack.c.l.b16 %v51
  %v132 = vunpack.c.l.b16 %v52
  %v133 = vpack.c.b16 %v118, %v117
  %v134 = vpack.c.b16 %v120, %v119
  %v135 = vpack.c.b16 %v122, %v121
  %v136 = vpack.c.b16 %v124, %v123
  %v137 = vpack.c.b16 %v126, %v125
  %v138 = vpack.c.b16 %v128, %v127
  %v139 = vpack.c.b16 %v130, %v129
  %v140 = vpack.c.b16 %v132, %v131
  %149 = vmatprep.subr.bf16.mxu0 0
  %150 = vmatpush1.bf16.msra.mxu0 %v133
  %151 = vmatprep.subr.bf16.mxu0 0
  %152 = vmatpush1.bf16.msra.mxu0 %v134
  %153 = vmatprep.subr.bf16.mxu0 0
  %154 = vmatpush1.bf16.msra.mxu0 %v135
  %155 = vmatprep.subr.bf16.mxu0 0
  %156 = vmatpush1.bf16.msra.mxu0 %v136
  %157 = vmatprep.subr.bf16.mxu0 0
  %158 = vmatpush1.bf16.msra.mxu0 %v137
  %159 = vmatprep.subr.bf16.mxu0 0
  %160 = vmatpush1.bf16.msra.mxu0 %v138
  %161 = vmatprep.subr.bf16.mxu0 0
  %162 = vmatpush1.bf16.msra.mxu0 %v139
  %163 = vmatprep.subr.bf16.mxu0 0
  %164 = vmatpush1.bf16.msra.mxu0 %v140
  %165 = vmatprep.subr.bf16.mxu0 0
  %166 = vmatpush1.bf16.msra.mxu0 0
  %167 = vmatprep.subr.bf16.mxu0 0
  %168 = vmatpush1.bf16.msra.mxu0 0
  %169 = vmatprep.subr.bf16.mxu0 0
  %170 = vmatpush1.bf16.msra.mxu0 0
  %171 = vmatprep.subr.bf16.mxu0 0
  %172 = vmatpush1.bf16.msra.mxu0 0
  %173 = vmatprep.subr.bf16.mxu0 0
  %174 = vmatpush1.bf16.msra.mxu0 0
  %175 = vmatprep.subr.bf16.mxu0 0
  %176 = vmatpush1.bf16.msra.mxu0 0
  %177 = vmatprep.subr.bf16.mxu0 0
  %178 = vmatpush1.bf16.msra.mxu0 0
  %179 = vmatprep.subr.bf16.mxu0 0
  %180 = vmatpush1.bf16.msra.mxu0 0
  %181 = vmatprep.mubr.bf16.mxu0 0
  %182 = vmatmul.mubr.bf16.gmra.mrb[0].mxu0 %v85
  %v183 = vpop.f32.mrb[0].mxu0
  %v184 = vadd.f32 0.0, %v183
  %v185 = vpop.f32.mrb[0].mxu0
  %v186 = vpop.f32.mrb[0].mxu0
  %v187 = vadd.f32 0.0, %v186
  %v188 = vpop.f32.mrb[0].mxu0
  %189 = vmatprep.mubr.bf16.mxu0 0
  %190 = vmatmul.mubr.bf16.gmra.mrb[0].mxu0 %v86
  %v191 = vpop.f32.mrb[0].mxu0
  %v192 = vadd.f32 0.0, %v191
  %v193 = vpop.f32.mrb[0].mxu0
  %v194 = vpop.f32.mrb[0].mxu0
  %v195 = vadd.f32 0.0, %v194
  %v196 = vpop.f32.mrb[0].mxu0
  %197 = vmatprep.mubr.bf16.mxu0 0
  %198 = vmatmul.mubr.bf16.gmra.mrb[0].mxu0 %v87
  %v199 = vpop.f32.mrb[0].mxu0
  %v200 = vadd.f32 0.0, %v199
  %v201 = vpop.f32.mrb[0].mxu0
  %v202 = vpop.f32.mrb[0].mxu0
  %v203 = vadd.f32 0.0, %v202
  %v204 = vpop.f32.mrb[0].mxu0
  %205 = vmatprep.mubr.bf16.mxu0 0
  %206 = vmatmul.mubr.bf16.gmra.mrb[0].mxu0 %v88
  %v207 = vpop.f32.mrb[0].mxu0
  %v208 = vadd.f32 0.0, %v207
  %v209 = vpop.f32.mrb[0].mxu0
  %v210 = vpop.f32.mrb[0].mxu0
  %v211 = vadd.f32 0.0, %v210
  %v212 = vpop.f32.mrb[0].mxu0
  %213 = vmatprep.mubr.bf16.mxu0 0
  %214 = vmatmul.mubr.bf16.gmra.mrb[0].mxu0 %v89
  %v215 = vpop.f32.mrb[0].mxu0
  %v216 = vadd.f32 0.0, %v215
  %v217 = vpop.f32.mrb[0].mxu0
  %v218 = vpop.f32.mrb[0].mxu0
  %v219 = vadd.f32 0.0, %v218
  %v220 = vpop.f32.mrb[0].mxu0
  %221 = vmatprep.mubr.bf16.mxu0 0
  %222 = vmatmul.mubr.bf16.gmra.mrb[0].mxu0 %v90
  %v223 = vpop.f32.mrb[0].mxu0
  %v224 = vadd.f32 0.0, %v223
  %v225 = vpop.f32.mrb[0].mxu0
  %v226 = vpop.f32.mrb[0].mxu0
  %v227 = vadd.f32 0.0, %v226
  %v228 = vpop.f32.mrb[0].mxu0
  %229 = vmatprep.mubr.bf16.mxu0 0
  %230 = vmatmul.mubr.bf16.gmra.mrb[0].mxu0 %v91
  %v231 = vpop.f32.mrb[0].mxu0
  %v232 = vadd.f32 0.0, %v231
  %v233 = vpop.f32.mrb[0].mxu0
  %v234 = vpop.f32.mrb[0].mxu0
  %v235 = vadd.f32 0.0, %v234
  %v236 = vpop.f32.mrb[0].mxu0
  %237 = vmatprep.mubr.bf16.mxu0 0
  %238 = vmatmul.mubr.bf16.gmra.mrb[0].mxu0 %v92
  %v239 = vpop.f32.mrb[0].mxu0
  %v240 = vadd.f32 0.0, %v239
  %v241 = vpop.f32.mrb[0].mxu0
  %v242 = vpop.f32.mrb[0].mxu0
  %v243 = vadd.f32 0.0, %v242
  %v244 = vpop.f32.mrb[0].mxu0
  %245 = vdwg.mxu0
  %p246 = scmp.eq.s32.totalorder 0, 0
  // Predicated region
  $region22: #{sage_net_forward.3} parent=0 // pred_check
    %p247 = pneg %p246
  $region23: #{sage_net_forward.3} parent=0 // pred_check_branch
    %249 = sbr.rel (%p247) target = $region25
  $region24: #{sage_net_forward.3} parent=0 // pred_region
    %v250 = vld [vmem:[%s2] sm:$0xf]
    %v251 = vld [vmem:[%s2 + $0x4] sm:$0xf]
    %v252 = vld [vmem:[%s2 + $0x8] sm:$0xf]
    %v253 = vld [vmem:[%s2 + $0xc] sm:$0xf]
    %v254 = vld [vmem:[%s2 + $0x10] sm:$0xf]
    %v255 = vld [vmem:[%s2 + $0x14] sm:$0xf]
    %v256 = vld [vmem:[%s2 + $0x18] sm:$0xf]
    %v257 = vld [vmem:[%s2 + $0x1c] sm:$0xf]
    %v258 = vld [vmem:[%s2 + $0x20] sm:$0xf]
    %v259 = vld [vmem:[%s2 + $0x24] sm:$0xf]
    %v260 = vld [vmem:[%s2 + $0x28] sm:$0xf]
    %v261 = vld [vmem:[%s2 + $0x2c] sm:$0xf]
    %v262 = vld [vmem:[%s2 + $0x30] sm:$0xf]
    %v263 = vld [vmem:[%s2 + $0x34] sm:$0xf]
    %v264 = vld [vmem:[%s2 + $0x38] sm:$0xf]
    %v265 = vld [vmem:[%s2 + $0x3c] sm:$0xf]
    %v266 = vunpack.c.l.bf16 %v250
    %v267 = vunpack.c.l.bf16 %v251
    %v268 = vunpack.c.l.bf16 %v252
    %v269 = vunpack.c.l.bf16 %v253
    %v270 = vunpack.c.l.bf16 %v254
    %v271 = vunpack.c.l.bf16 %v255
    %v272 = vunpack.c.l.bf16 %v256
    %v273 = vunpack.c.l.bf16 %v257
    %v274 = vunpack.c.l.bf16 %v258
    %v275 = vunpack.c.l.bf16 %v259
    %v276 = vunpack.c.l.bf16 %v260
    %v277 = vunpack.c.l.bf16 %v261
    %v278 = vunpack.c.l.bf16 %v262
    %v279 = vunpack.c.l.bf16 %v263
    %v280 = vunpack.c.l.bf16 %v264
    %v281 = vunpack.c.l.bf16 %v265
    %282 = vst [vmem:[#allocation2] sm:$0xff] %v266
    %283 = vst [vmem:[#allocation2 + $0x10] sm:$0xff] %v267
    %284 = vst [vmem:[#allocation2 + $0x20] sm:$0xff] %v268
    %285 = vst [vmem:[#allocation2 + $0x30] sm:$0xff] %v269
    %286 = vst [vmem:[#allocation2 + $0x40] sm:$0xff] %v270
    %287 = vst [vmem:[#allocation2 + $0x50] sm:$0xff] %v271
    %288 = vst [vmem:[#allocation2 + $0x60] sm:$0xff] %v272
    %289 = vst [vmem:[#allocation2 + $0x70] sm:$0xff] %v273
    %290 = vst [vmem:[#allocation2 + $0x80] sm:$0xff] %v274
    %291 = vst [vmem:[#allocation2 + $0x90] sm:$0xff] %v275
    %292 = vst [vmem:[#allocation2 + $0xa0] sm:$0xff] %v276
    %293 = vst [vmem:[#allocation2 + $0xb0] sm:$0xff] %v277
    %294 = vst [vmem:[#allocation2 + $0xc0] sm:$0xff] %v278
    %295 = vst [vmem:[#allocation2 + $0xd0] sm:$0xff] %v279
    %296 = vst [vmem:[#allocation2 + $0xe0] sm:$0xff] %v280
    %297 = vst [vmem:[#allocation2 + $0xf0] sm:$0xff] %v281
    %298 = vst [vmem:[#allocation2 + $0x8] sm:$0xff] %v184
    %299 = vst [vmem:[#allocation2 + $0x18] sm:$0xff] %v187
    %300 = vst [vmem:[#allocation2 + $0x28] sm:$0xff] %v192
    %301 = vst [vmem:[#allocation2 + $0x38] sm:$0xff] %v195
    %302 = vst [vmem:[#allocation2 + $0x48] sm:$0xff] %v200
    %303 = vst [vmem:[#allocation2 + $0x58] sm:$0xff] %v203
    %304 = vst [vmem:[#allocation2 + $0x68] sm:$0xff] %v208
    %305 = vst [vmem:[#allocation2 + $0x78] sm:$0xff] %v211
    %306 = vst [vmem:[#allocation2 + $0x88] sm:$0xff] %v216
    %307 = vst [vmem:[#allocation2 + $0x98] sm:$0xff] %v219
    %308 = vst [vmem:[#allocation2 + $0xa8] sm:$0xff] %v224
    %309 = vst [vmem:[#allocation2 + $0xb8] sm:$0xff] %v227
    %310 = vst [vmem:[#allocation2 + $0xc8] sm:$0xff] %v232
    %311 = vst [vmem:[#allocation2 + $0xd8] sm:$0xff] %v235
    %312 = vst [vmem:[#allocation2 + $0xe8] sm:$0xff] %v240
    %313 = vst [vmem:[#allocation2 + $0xf8] sm:$0xff] %v243
  $region25: #{sage_net_forward.3} parent=0 // pred_fallthru
    _
  %p314 = scmp.ne.s32.totalorder 0, 0
  // Predicated region
  $region26: #{sage_net_forward.3} parent=0 // pred_check
    %p315 = pneg %p314
  $region27: #{sage_net_forward.3} parent=0 // pred_check_branch
    %317 = sbr.rel (%p315) target = $region29
  $region28: #{sage_net_forward.3} parent=0 // pred_region
    %v318 = vld [vmem:[#allocation2 + $0x8] sm:$0xff]
    %v319 = vld [vmem:[#allocation2 + $0x18] sm:$0xff]
    %v320 = vld [vmem:[#allocation2 + $0x28] sm:$0xff]
    %v321 = vld [vmem:[#allocation2 + $0x38] sm:$0xff]
    %v322 = vld [vmem:[#allocation2 + $0x48] sm:$0xff]
    %v323 = vld [vmem:[#allocation2 + $0x58] sm:$0xff]
    %v324 = vld [vmem:[#allocation2 + $0x68] sm:$0xff]
    %v325 = vld [vmem:[#allocation2 + $0x78] sm:$0xff]
    %v326 = vld [vmem:[#allocation2 + $0x88] sm:$0xff]
    %v327 = vld [vmem:[#allocation2 + $0x98] sm:$0xff]
    %v328 = vld [vmem:[#allocation2 + $0xa8] sm:$0xff]
    %v329 = vld [vmem:[#allocation2 + $0xb8] sm:$0xff]
    %v330 = vld [vmem:[#allocation2 + $0xc8] sm:$0xff]
    %v331 = vld [vmem:[#allocation2 + $0xd8] sm:$0xff]
    %v332 = vld [vmem:[#allocation2 + $0xe8] sm:$0xff]
    %v333 = vld [vmem:[#allocation2 + $0xf8] sm:$0xff]
    %v334 = vadd.f32 %v318, %v184
    %v335 = vadd.f32 %v319, %v187
    %v336 = vadd.f32 %v320, %v192
    %v337 = vadd.f32 %v321, %v195
    %v338 = vadd.f32 %v322, %v200
    %v339 = vadd.f32 %v323, %v203
    %v340 = vadd.f32 %v324, %v208
    %v341 = vadd.f32 %v325, %v211
    %v342 = vadd.f32 %v326, %v216
    %v343 = vadd.f32 %v327, %v219
    %v344 = vadd.f32 %v328, %v224
    %v345 = vadd.f32 %v329, %v227
    %v346 = vadd.f32 %v330, %v232
    %v347 = vadd.f32 %v331, %v235
    %v348 = vadd.f32 %v332, %v240
    %v349 = vadd.f32 %v333, %v243
    %350 = vst [vmem:[#allocation2 + $0x8] sm:$0xff] %v334
    %351 = vst [vmem:[#allocation2 + $0x18] sm:$0xff] %v335
    %352 = vst [vmem:[#allocation2 + $0x28] sm:$0xff] %v336
    %353 = vst [vmem:[#allocation2 + $0x38] sm:$0xff] %v337
    %354 = vst [vmem:[#allocation2 + $0x48] sm:$0xff] %v338
    %355 = vst [vmem:[#allocation2 + $0x58] sm:$0xff] %v339
    %356 = vst [vmem:[#allocation2 + $0x68] sm:$0xff] %v340
    %357 = vst [vmem:[#allocation2 + $0x78] sm:$0xff] %v341
    %358 = vst [vmem:[#allocation2 + $0x88] sm:$0xff] %v342
    %359 = vst [vmem:[#allocation2 + $0x98] sm:$0xff] %v343
    %360 = vst [vmem:[#allocation2 + $0xa8] sm:$0xff] %v344
    %361 = vst [vmem:[#allocation2 + $0xb8] sm:$0xff] %v345
    %362 = vst [vmem:[#allocation2 + $0xc8] sm:$0xff] %v346
    %363 = vst [vmem:[#allocation2 + $0xd8] sm:$0xff] %v347
    %364 = vst [vmem:[#allocation2 + $0xe8] sm:$0xff] %v348
    %365 = vst [vmem:[#allocation2 + $0xf8] sm:$0xff] %v349
  $region29: #{sage_net_forward.3} parent=0 // pred_fallthru
    _
  // Predicated region
  $region30: #{sage_net_forward.3} parent=0 // pred_check
    %p366 = pneg %p246
  $region31: #{sage_net_forward.3} parent=0 // pred_check_branch
    %368 = sbr.rel (%p366) target = $region33
  $region32: #{sage_net_forward.3} parent=0 // pred_region
    %v369 = vld [vmem:[#allocation2] sm:$0xff]
    %v370 = vld [vmem:[#allocation2 + $0x8] sm:$0xff]
    %v371 = vld [vmem:[#allocation2 + $0x10] sm:$0xff]
    %v372 = vld [vmem:[#allocation2 + $0x18] sm:$0xff]
    %v373 = vld [vmem:[#allocation2 + $0x20] sm:$0xff]
    %v374 = vld [vmem:[#allocation2 + $0x28] sm:$0xff]
    %v375 = vld [vmem:[#allocation2 + $0x30] sm:$0xff]
    %v376 = vld [vmem:[#allocation2 + $0x38] sm:$0xff]
    %v377 = vld [vmem:[#allocation2 + $0x40] sm:$0xff]
    %v378 = vld [vmem:[#allocation2 + $0x48] sm:$0xff]
    %v379 = vld [vmem:[#allocation2 + $0x50] sm:$0xff]
    %v380 = vld [vmem:[#allocation2 + $0x58] sm:$0xff]
    %v381 = vld [vmem:[#allocation2 + $0x60] sm:$0xff]
    %v382 = vld [vmem:[#allocation2 + $0x68] sm:$0xff]
    %v383 = vld [vmem:[#allocation2 + $0x70] sm:$0xff]
    %v384 = vld [vmem:[#allocation2 + $0x78] sm:$0xff]
    %v385 = vld [vmem:[#allocation2 + $0x80] sm:$0xff]
    %v386 = vld [vmem:[#allocation2 + $0x88] sm:$0xff]
    %v387 = vld [vmem:[#allocation2 + $0x90] sm:$0xff]
    %v388 = vld [vmem:[#allocation2 + $0x98] sm:$0xff]
    %v389 = vld [vmem:[#allocation2 + $0xa0] sm:$0xff]
    %v390 = vld [vmem:[#allocation2 + $0xa8] sm:$0xff]
    %v391 = vld [vmem:[#allocation2 + $0xb0] sm:$0xff]
    %v392 = vld [vmem:[#allocation2 + $0xb8] sm:$0xff]
    %v393 = vld [vmem:[#allocation2 + $0xc0] sm:$0xff]
    %v394 = vld [vmem:[#allocation2 + $0xc8] sm:$0xff]
    %v395 = vld [vmem:[#allocation2 + $0xd0] sm:$0xff]
    %v396 = vld [vmem:[#allocation2 + $0xd8] sm:$0xff]
    %v397 = vld [vmem:[#allocation2 + $0xe0] sm:$0xff]
    %v398 = vld [vmem:[#allocation2 + $0xe8] sm:$0xff]
    %v399 = vld [vmem:[#allocation2 + $0xf0] sm:$0xff]
    %v400 = vld [vmem:[#allocation2 + $0xf8] sm:$0xff]
    %v401 = vld [vmem:[%s3] sm:$0xff]
    %v402 = vld [vmem:[%s3 + $0x8] sm:$0xff]
    %v403 = vld [vmem:[%s3 + $0x10] sm:$0xff]
    %v404 = vld [vmem:[%s3 + $0x18] sm:$0xff]
    %v405 = vld [vmem:[%s3 + $0x20] sm:$0xff]
    %v406 = vld [vmem:[%s3 + $0x28] sm:$0xff]
    %v407 = vld [vmem:[%s3 + $0x30] sm:$0xff]
    %v408 = vld [vmem:[%s3 + $0x38] sm:$0xff]
    %v409 = vld [vmem:[%s3 + $0x40] sm:$0xff]
    %v410 = vld [vmem:[%s3 + $0x48] sm:$0xff]
    %v411 = vld [vmem:[%s3 + $0x50] sm:$0xff]
    %v412 = vld [vmem:[%s3 + $0x58] sm:$0xff]
    %v413 = vld [vmem:[%s3 + $0x60] sm:$0xff]
    %v414 = vld [vmem:[%s3 + $0x68] sm:$0xff]
    %v415 = vld [vmem:[%s3 + $0x70] sm:$0xff]
    %v416 = vld [vmem:[%s3 + $0x78] sm:$0xff]
    %v417 = vld [vmem:[%s3 + $0x80] sm:$0xff]
    %v418 = vld [vmem:[%s3 + $0x88] sm:$0xff]
    %v419 = vld [vmem:[%s3 + $0x90] sm:$0xff]
    %v420 = vld [vmem:[%s3 + $0x98] sm:$0xff]
    %v421 = vld [vmem:[%s3 + $0xa0] sm:$0xff]
    %v422 = vld [vmem:[%s3 + $0xa8] sm:$0xff]
    %v423 = vld [vmem:[%s3 + $0xb0] sm:$0xff]
    %v424 = vld [vmem:[%s3 + $0xb8] sm:$0xff]
    %v425 = vld [vmem:[%s3 + $0xc0] sm:$0xff]
    %v426 = vld [vmem:[%s3 + $0xc8] sm:$0xff]
    %v427 = vld [vmem:[%s3 + $0xd0] sm:$0xff]
    %v428 = vld [vmem:[%s3 + $0xd8] sm:$0xff]
    %v429 = vld [vmem:[%s3 + $0xe0] sm:$0xff]
    %v430 = vld [vmem:[%s3 + $0xe8] sm:$0xff]
    %v431 = vld [vmem:[%s3 + $0xf0] sm:$0xff]
    %v432 = vld [vmem:[%s3 + $0xf8] sm:$0xff]
    %v433 = vld [vmem:[%s4] sm:$0x1]
    %v435 = vlaneseq
    %v436 = vshrl.u32 %v435, 7
    %v437 = vsub.s32 0, %v436
    %v438 = vrot.slane %v433, %v437
    %440 = vmatprep.subr.mxu0 0.0
    %441 = vmatpush1.msra.mxu0 %v401
    %442 = vmatprep.subr.mxu0 0.0
    %443 = vmatpush1.msra.mxu0 %v402
    %444 = vmatprep.subr.mxu0 0.0
    %445 = vmatpush1.msra.mxu0 %v403
    %446 = vmatprep.subr.mxu0 0.0
    %447 = vmatpush1.msra.mxu0 %v404
    %448 = vmatprep.subr.mxu0 0.0
    %449 = vmatpush1.msra.mxu0 %v405
    %450 = vmatprep.subr.mxu0 0.0
    %451 = vmatpush1.msra.mxu0 %v406
    %452 = vmatprep.subr.mxu0 0.0
    %453 = vmatpush1.msra.mxu0 %v407
    %454 = vmatprep.subr.mxu0 0.0
    %455 = vmatpush1.msra.mxu0 %v408
    %456 = vmatprep.subr.mxu0 0.0
    %457 = vmatpush1.msra.mxu0 %v409
    %458 = vmatprep.subr.mxu0 0.0
    %459 = vmatpush1.msra.mxu0 %v410
    %460 = vmatprep.subr.mxu0 0.0
    %461 = vmatpush1.msra.mxu0 %v411
    %462 = vmatprep.subr.mxu0 0.0
    %463 = vmatpush1.msra.mxu0 %v412
    %464 = vmatprep.subr.mxu0 0.0
    %465 = vmatpush1.msra.mxu0 %v413
    %466 = vmatprep.subr.mxu0 0.0
    %467 = vmatpush1.msra.mxu0 %v414
    %468 = vmatprep.subr.mxu0 0.0
    %469 = vmatpush1.msra.mxu0 %v415
    %470 = vmatprep.subr.mxu0 0.0
    %471 = vmatpush1.msra.mxu0 %v416
    %472 = vmatprep.subr.mxu0 0.0
    %473 = vmatpush1.msra.mxu0 %v417
    %474 = vmatprep.subr.mxu0 0.0
    %475 = vmatpush1.msra.mxu0 %v418
    %476 = vmatprep.subr.mxu0 0.0
    %477 = vmatpush1.msra.mxu0 %v419
    %478 = vmatprep.subr.mxu0 0.0
    %479 = vmatpush1.msra.mxu0 %v420
    %480 = vmatprep.subr.mxu0 0.0
    %481 = vmatpush1.msra.mxu0 %v421
    %482 = vmatprep.subr.mxu0 0.0
    %483 = vmatpush1.msra.mxu0 %v422
    %484 = vmatprep.subr.mxu0 0.0
    %485 = vmatpush1.msra.mxu0 %v423
    %486 = vmatprep.subr.mxu0 0.0
    %487 = vmatpush1.msra.mxu0 %v424
    %488 = vmatprep.subr.mxu0 0.0
    %489 = vmatpush1.msra.mxu0 %v425
    %490 = vmatprep.subr.mxu0 0.0
    %491 = vmatpush1.msra.mxu0 %v426
    %492 = vmatprep.subr.mxu0 0.0
    %493 = vmatpush1.msra.mxu0 %v427
    %494 = vmatprep.subr.mxu0 0.0
    %495 = vmatpush1.msra.mxu0 %v428
    %496 = vmatprep.subr.mxu0 0.0
    %497 = vmatpush1.msra.mxu0 %v429
    %498 = vmatprep.subr.mxu0 0.0
    %499 = vmatpush1.msra.mxu0 %v430
    %500 = vmatprep.subr.mxu0 0.0
    %501 = vmatpush1.msra.mxu0 %v431
    %502 = vmatprep.subr.mxu0 0.0
    %503 = vmatpush1.msra.mxu0 %v432
    %504 = vmatprep.mubr.f32.mxu0 %v370
    %505 = vmatmul.mubr.f32.gmra.mrb[0].mxu0 %v369
    %v506 = vpop.f32.mrb[0].mxu0
    %v507 = vadd.f32 %v438, %v506
    %v508 = vpop.f32.mrb[0].mxu0
    %509 = vmatprep.mubr.f32.mxu0 %v372
    %510 = vmatmul.mubr.f32.gmra.mrb[0].mxu0 %v371
    %v511 = vpop.f32.mrb[0].mxu0
    %v512 = vadd.f32 %v438, %v511
    %v513 = vpop.f32.mrb[0].mxu0
    %514 = vmatprep.mubr.f32.mxu0 %v374
    %515 = vmatmul.mubr.f32.gmra.mrb[0].mxu0 %v373
    %v516 = vpop.f32.mrb[0].mxu0
    %v517 = vadd.f32 %v438, %v516
    %v518 = vpop.f32.mrb[0].mxu0
    %519 = vmatprep.mubr.f32.mxu0 %v376
    %520 = vmatmul.mubr.f32.gmra.mrb[0].mxu0 %v375
    %v521 = vpop.f32.mrb[0].mxu0
    %v522 = vadd.f32 %v438, %v521
    %v523 = vpop.f32.mrb[0].mxu0
    %524 = vmatprep.mubr.f32.mxu0 %v378
    %525 = vmatmul.mubr.f32.gmra.mrb[0].mxu0 %v377
    %v526 = vpop.f32.mrb[0].mxu0
    %v527 = vadd.f32 %v438, %v526
    %v528 = vpop.f32.mrb[0].mxu0
    %529 = vmatprep.mubr.f32.mxu0 %v380
    %530 = vmatmul.mubr.f32.gmra.mrb[0].mxu0 %v379
    %v531 = vpop.f32.mrb[0].mxu0
    %v532 = vadd.f32 %v438, %v531
    %v533 = vpop.f32.mrb[0].mxu0
    %534 = vmatprep.mubr.f32.mxu0 %v382
    %535 = vmatmul.mubr.f32.gmra.mrb[0].mxu0 %v381
    %v536 = vpop.f32.mrb[0].mxu0
    %v537 = vadd.f32 %v438, %v536
    %v538 = vpop.f32.mrb[0].mxu0
    %539 = vmatprep.mubr.f32.mxu0 %v384
    %540 = vmatmul.mubr.f32.gmra.mrb[0].mxu0 %v383
    %v541 = vpop.f32.mrb[0].mxu0
    %v542 = vadd.f32 %v438, %v541
    %v543 = vpop.f32.mrb[0].mxu0
    %544 = vmatprep.mubr.f32.mxu0 %v386
    %545 = vmatmul.mubr.f32.gmra.mrb[0].mxu0 %v385
    %v546 = vpop.f32.mrb[0].mxu0
    %v547 = vadd.f32 %v438, %v546
    %v548 = vpop.f32.mrb[0].mxu0
    %549 = vmatprep.mubr.f32.mxu0 %v388
    %550 = vmatmul.mubr.f32.gmra.mrb[0].mxu0 %v387
    %v551 = vpop.f32.mrb[0].mxu0
    %v552 = vadd.f32 %v438, %v551
    %v553 = vpop.f32.mrb[0].mxu0
    %554 = vmatprep.mubr.f32.mxu0 %v390
    %555 = vmatmul.mubr.f32.gmra.mrb[0].mxu0 %v389
    %v556 = vpop.f32.mrb[0].mxu0
    %v557 = vadd.f32 %v438, %v556
    %v558 = vpop.f32.mrb[0].mxu0
    %559 = vmatprep.mubr.f32.mxu0 %v392
    %560 = vmatmul.mubr.f32.gmra.mrb[0].mxu0 %v391
    %v561 = vpop.f32.mrb[0].mxu0
    %v562 = vadd.f32 %v438, %v561
    %v563 = vpop.f32.mrb[0].mxu0
    %564 = vmatprep.mubr.f32.mxu0 %v394
    %565 = vmatmul.mubr.f32.gmra.mrb[0].mxu0 %v393
    %v566 = vpop.f32.mrb[0].mxu0
    %v567 = vadd.f32 %v438, %v566
    %v568 = vpop.f32.mrb[0].mxu0
    %569 = vmatprep.mubr.f32.mxu0 %v396
    %570 = vmatmul.mubr.f32.gmra.mrb[0].mxu0 %v395
    %v571 = vpop.f32.mrb[0].mxu0
    %v572 = vadd.f32 %v438, %v571
    %v573 = vpop.f32.mrb[0].mxu0
    %574 = vmatprep.mubr.f32.mxu0 %v398
    %575 = vmatmul.mubr.f32.gmra.mrb[0].mxu0 %v397
    %v576 = vpop.f32.mrb[0].mxu0
    %v577 = vadd.f32 %v438, %v576
    %v578 = vpop.f32.mrb[0].mxu0
    %579 = vmatprep.mubr.f32.mxu0 %v400
    %580 = vmatmul.mubr.f32.gmra.mrb[0].mxu0 %v399
    %v581 = vpop.f32.mrb[0].mxu0
    %v582 = vadd.f32 %v438, %v581
    %v583 = vpop.f32.mrb[0].mxu0
    %584 = vdwg.mxu0
    %v585 = vlaneseq
    %v586 = vand.u32 %v585, 127
    %vm587 = vcmp.lt.s32.totalorder %v586, 4
    %v588 = vsel %vm587, %v507, -1e+30
    %v589 = vsel %vm587, %v512, -1e+30
    %v590 = vsel %vm587, %v517, -1e+30
    %v591 = vsel %vm587, %v522, -1e+30
    %v592 = vsel %vm587, %v527, -1e+30
    %v593 = vsel %vm587, %v532, -1e+30
    %v594 = vsel %vm587, %v537, -1e+30
    %v595 = vsel %vm587, %v542, -1e+30
    %v596 = vsel %vm587, %v547, -1e+30
    %v597 = vsel %vm587, %v552, -1e+30
    %v598 = vsel %vm587, %v557, -1e+30
    %v599 = vsel %vm587, %v562, -1e+30
    %v600 = vsel %vm587, %v567, -1e+30
    %v601 = vsel %vm587, %v572, -1e+30
    %v602 = vsel %vm587, %v577, -1e+30
    %v603 = vsel %vm587, %v582, -1e+30
    %604 = vmax.xlane.f32.xlu0 %v588
    %v605 = vpop.xlane.xlu0 %604
    %606 = vmax.xlane.f32.xlu0 %v589
    %v607 = vpop.xlane.xlu0 %606
    %608 = vmax.xlane.f32.xlu0 %v590
    %v609 = vpop.xlane.xlu0 %608
    %610 = vmax.xlane.f32.xlu0 %v591
    %v611 = vpop.xlane.xlu0 %610
    %612 = vmax.xlane.f32.xlu0 %v592
    %v613 = vpop.xlane.xlu0 %612
    %614 = vmax.xlane.f32.xlu0 %v593
    %v615 = vpop.xlane.xlu0 %614
    %616 = vmax.xlane.f32.xlu0 %v594
    %v617 = vpop.xlane.xlu0 %616
    %618 = vmax.xlane.f32.xlu0 %v595
    %v619 = vpop.xlane.xlu0 %618
    %620 = vmax.xlane.f32.xlu0 %v596
    %v621 = vpop.xlane.xlu0 %620
    %622 = vmax.xlane.f32.xlu0 %v597
    %v623 = vpop.xlane.xlu0 %622
    %624 = vmax.xlane.f32.xlu0 %v598
    %v625 = vpop.xlane.xlu0 %624
    %626 = vmax.xlane.f32.xlu0 %v599
    %v627 = vpop.xlane.xlu0 %626
    %628 = vmax.xlane.f32.xlu0 %v600
    %v629 = vpop.xlane.xlu0 %628
    %630 = vmax.xlane.f32.xlu0 %v601
    %v631 = vpop.xlane.xlu0 %630
    %632 = vmax.xlane.f32.xlu0 %v602
    %v633 = vpop.xlane.xlu0 %632
    %634 = vmax.xlane.f32.xlu0 %v603
    %v635 = vpop.xlane.xlu0 %634
    %v636 = vsub.f32 %v588, %v605
    %v637 = vsub.f32 %v589, %v607
    %v638 = vsub.f32 %v590, %v609
    %v639 = vsub.f32 %v591, %v611
    %v640 = vsub.f32 %v592, %v613
    %v641 = vsub.f32 %v593, %v615
    %v642 = vsub.f32 %v594, %v617
    %v643 = vsub.f32 %v595, %v619
    %v644 = vsub.f32 %v596, %v621
    %v645 = vsub.f32 %v597, %v623
    %v646 = vsub.f32 %v598, %v625
    %v647 = vsub.f32 %v599, %v627
    %v648 = vsub.f32 %v600, %v629
    %v649 = vsub.f32 %v601, %v631
    %v650 = vsub.f32 %v602, %v633
    %v651 = vsub.f32 %v603, %v635
    %v652 = vmul.f32 %v636, 1.442695
    %v653 = vpow.pop %v652
    %v654 = vmul.f32 %v637, 1.442695
    %v655 = vpow.pop %v654
    %v656 = vmul.f32 %v638, 1.442695
    %v657 = vpow.pop %v656
    %v658 = vmul.f32 %v639, 1.442695
    %v659 = vpow.pop %v658
    %v660 = vmul.f32 %v640, 1.442695
    %v661 = vpow.pop %v660
    %v662 = vmul.f32 %v641, 1.442695
    %v663 = vpow.pop %v662
    %v664 = vmul.f32 %v642, 1.442695
    %v665 = vpow.pop %v664
    %v666 = vmul.f32 %v643, 1.442695
    %v667 = vpow.pop %v666
    %v668 = vmul.f32 %v644, 1.442695
    %v669 = vpow.pop %v668
    %v670 = vmul.f32 %v645, 1.442695
    %v671 = vpow.pop %v670
    %v672 = vmul.f32 %v646, 1.442695
    %v673 = vpow.pop %v672
    %v674 = vmul.f32 %v647, 1.442695
    %v675 = vpow.pop %v674
    %v676 = vmul.f32 %v648, 1.442695
    %v677 = vpow.pop %v676
    %v678 = vmul.f32 %v649, 1.442695
    %v679 = vpow.pop %v678
    %v680 = vmul.f32 %v650, 1.442695
    %v681 = vpow.pop %v680
    %v682 = vmul.f32 %v651, 1.442695
    %v683 = vpow.pop %v682
    %v684 = vsel %vm587, %v653, 0.0
    %v685 = vsel %vm587, %v655, 0.0
    %v686 = vsel %vm587, %v657, 0.0
    %v687 = vsel %vm587, %v659, 0.0
    %v688 = vsel %vm587, %v661, 0.0
    %v689 = vsel %vm587, %v663, 0.0
    %v690 = vsel %vm587, %v665, 0.0
    %v691 = vsel %vm587, %v667, 0.0
    %v692 = vsel %vm587, %v669, 0.0
    %v693 = vsel %vm587, %v671, 0.0
    %v694 = vsel %vm587, %v673, 0.0
    %v695 = vsel %vm587, %v675, 0.0
    %v696 = vsel %vm587, %v677, 0.0
    %v697 = vsel %vm587, %v679, 0.0
    %v698 = vsel %vm587, %v681, 0.0
    %v699 = vsel %vm587, %v683, 0.0
    %700 = vadd.xlane.f32.xlu0 %v684
    %v701 = vpop.xlane.xlu0 %700
    %702 = vadd.xlane.f32.xlu0 %v685
    %v703 = vpop.xlane.xlu0 %702
    %704 = vadd.xlane.f32.xlu0 %v686
    %v705 = vpop.xlane.xlu0 %704
    %706 = vadd.xlane.f32.xlu0 %v687
    %v707 = vpop.xlane.xlu0 %706
    %708 = vadd.xlane.f32.xlu0 %v688
    %v709 = vpop.xlane.xlu0 %708
    %710 = vadd.xlane.f32.xlu0 %v689
    %v711 = vpop.xlane.xlu0 %710
    %712 = vadd.xlane.f32.xlu0 %v690
    %v713 = vpop.xlane.xlu0 %712
    %714 = vadd.xlane.f32.xlu0 %v691
    %v715 = vpop.xlane.xlu0 %714
    %716 = vadd.xlane.f32.xlu0 %v692
    %v717 = vpop.xlane.xlu0 %716
    %718 = vadd.xlane.f32.xlu0 %v693
    %v719 = vpop.xlane.xlu0 %718
    %720 = vadd.xlane.f32.xlu0 %v694
    %v721 = vpop.xlane.xlu0 %720
    %722 = vadd.xlane.f32.xlu0 %v695
    %v723 = vpop.xlane.xlu0 %722
    %724 = vadd.xlane.f32.xlu0 %v696
    %v725 = vpop.xlane.xlu0 %724
    %726 = vadd.xlane.f32.xlu0 %v697
    %v727 = vpop.xlane.xlu0 %726
    %728 = vadd.xlane.f32.xlu0 %v698
    %v729 = vpop.xlane.xlu0 %728
    %730 = vadd.xlane.f32.xlu0 %v699
    %v731 = vpop.xlane.xlu0 %730
    %v732 = vlog2.pop %v701
    %v733 = vmul.f32 %v732, 0.6931472
    %v734 = vlog2.pop %v703
    %v735 = vmul.f32 %v734, 0.6931472
    %v736 = vlog2.pop %v705
    %v737 = vmul.f32 %v736, 0.6931472
    %v738 = vlog2.pop %v707
    %v739 = vmul.f32 %v738, 0.6931472
    %v740 = vlog2.pop %v709
    %v741 = vmul.f32 %v740, 0.6931472
    %v742 = vlog2.pop %v711
    %v743 = vmul.f32 %v742, 0.6931472
    %v744 = vlog2.pop %v713
    %v745 = vmul.f32 %v744, 0.6931472
    %v746 = vlog2.pop %v715
    %v747 = vmul.f32 %v746, 0.6931472
    %v748 = vlog2.pop %v717
    %v749 = vmul.f32 %v748, 0.6931472
    %v750 = vlog2.pop %v719
    %v751 = vmul.f32 %v750, 0.6931472
    %v752 = vlog2.pop %v721
    %v753 = vmul.f32 %v752, 0.6931472
    %v754 = vlog2.pop %v723
    %v755 = vmul.f32 %v754, 0.6931472
    %v756 = vlog2.pop %v725
    %v757 = vmul.f32 %v756, 0.6931472
    %v758 = vlog2.pop %v727
    %v759 = vmul.f32 %v758, 0.6931472
    %v760 = vlog2.pop %v729
    %v761 = vmul.f32 %v760, 0.6931472
    %v762 = vlog2.pop %v731
    %v763 = vmul.f32 %v762, 0.6931472
    %v764 = vsub.f32 %v636, %v733
    %v765 = vsub.f32 %v637, %v735
    %v766 = vsub.f32 %v638, %v737
    %v767 = vsub.f32 %v639, %v739
    %v768 = vsub.f32 %v640, %v741
    %v769 = vsub.f32 %v641, %v743
    %v770 = vsub.f32 %v642, %v745
    %v771 = vsub.f32 %v643, %v747
    %v772 = vsub.f32 %v644, %v749
    %v773 = vsub.f32 %v645, %v751
    %v774 = vsub.f32 %v646, %v753
    %v775 = vsub.f32 %v647, %v755
    %v776 = vsub.f32 %v648, %v757
    %v777 = vsub.f32 %v649, %v759
    %v778 = vsub.f32 %v650, %v761
    %v779 = vsub.f32 %v651, %v763
    %780 = vst [vmem:[%s5] sm:$0xff] %v764
    %781 = vst [vmem:[%s5 + $0x8] sm:$0xff] %v765
    %782 = vst [vmem:[%s5 + $0x10] sm:$0xff] %v766
    %783 = vst [vmem:[%s5 + $0x18] sm:$0xff] %v767
    %784 = vst [vmem:[%s5 + $0x20] sm:$0xff] %v768
    %785 = vst [vmem:[%s5 + $0x28] sm:$0xff] %v769
    %786 = vst [vmem:[%s5 + $0x30] sm:$0xff] %v770
    %787 = vst [vmem:[%s5 + $0x38] sm:$0xff] %v771
    %788 = vst [vmem:[%s5 + $0x40] sm:$0xff] %v772
    %789 = vst [vmem:[%s5 + $0x48] sm:$0xff] %v773
    %790 = vst [vmem:[%s5 + $0x50] sm:$0xff] %v774
    %791 = vst [vmem:[%s5 + $0x58] sm:$0xff] %v775
    %792 = vst [vmem:[%s5 + $0x60] sm:$0xff] %v776
    %793 = vst [vmem:[%s5 + $0x68] sm:$0xff] %v777
    %794 = vst [vmem:[%s5 + $0x70] sm:$0xff] %v778
    %795 = vst [vmem:[%s5 + $0x78] sm:$0xff] %v779
  $region33: #{sage_net_forward.3} parent=0 // pred_fallthru
    _
  // Predicated region
  $region34: #{sage_net_forward.3} parent=0 // pred_check
    _
  $region35: #{sage_net_forward.3} parent=0 // pred_check_branch
    %797 = sbr.rel (0) target = $region37
  $region36: #{sage_net_forward.3} parent=0 // pred_region
    _
  $region37: #{sage_net_forward.3} parent=0 // pred_fallthru
    _
  // Predicated region
  $region38: #{sage_net_forward.3} parent=0 // pred_check
    _
  $region39: #{sage_net_forward.3} parent=0 // pred_check_branch
    %799 = sbr.rel (0) target = $region41
  $region40: #{sage_net_forward.3} parent=0 // pred_region
    _
  $region41: #{sage_net_forward.3} parent=0 // pred_fallthru
    _

</llo_original>
